<compile_context>
chip_gen: v7x
topology: tpu7x:2x2x1
jax: 0.10.0
libtpu: 0.0.40
codegen_flags: <defaults>
</compile_context>

<pallas_src>
import functools

import jax
import jax.numpy as jnp
from jax import lax
from jax.experimental import pallas as pl
from jax.experimental.pallas import tpu as pltpu


def _elu_plus_one(x):
    # elu(x) + 1 == x + 1 (x > 0), exp(x) (x <= 0).  Clamp the exp argument so the
    # unselected branch never produces inf.
    return jnp.where(x > 0, x + 1.0, jnp.exp(jnp.minimum(x, 0.0)))


def _linear_attn_chunk(
    xq_ref, xk_ref, xv_ref,
    wq_ref, bq_ref, wk_ref, bk_ref, wv_ref, bv_ref, wo_ref, bo_ref,
    out_ref,
    s_ref, z_ref,
    *, n_heads, head_dim, scaling, eps,
):
    f32 = jnp.float32
    bf16 = jnp.bfloat16
    H, D = n_heads, head_dim
    C = out_ref.shape[0]

    # Reset carried recurrent state (S, Z) at the first chunk of every batch row.
    @pl.when(pl.program_id(1) == 0)
    def _():
        s_ref[...] = jnp.zeros_like(s_ref)
        z_ref[...] = jnp.zeros_like(z_ref)

    # ---- projections: bf16 operands on the MXU, f32 accumulation -------------
    q = jnp.dot(xq_ref[...].astype(bf16), wq_ref[...],
                preferred_element_type=f32) + bq_ref[...]
    k = jnp.dot(xk_ref[...].astype(bf16), wk_ref[...],
                preferred_element_type=f32) + bk_ref[...]
    v = jnp.dot(xv_ref[...].astype(bf16), wv_ref[...],
                preferred_element_type=f32) + bv_ref[...]

    qf = _elu_plus_one(q * scaling)      # (C, H*D)  phi(scaled q)
    kf = _elu_plus_one(k)                # (C, H*D)  phi(k)

    # Causal mask for intra-chunk scores (diagonal included: state is updated
    # with the current timestep before it is queried, as in the torch module).
    row = lax.broadcasted_iota(jnp.int32, (C, C), 0)
    col = lax.broadcasted_iota(jnp.int32, (C, C), 1)
    causal = row >= col

    attn_heads = []
    for h in range(H):
        sl = slice(h * D, (h + 1) * D)
        qh = qf[:, sl]                   # (C, D)
        kh = kf[:, sl]                   # (C, D)
        vh = v[:, sl]                    # (C, D)

        s_prev = s_ref[h]                # (D, D)
        z_prev = z_ref[h]                # (1, D)

        # Intra-chunk scores phi(q) @ phi(k)^T, causally masked  (MXU).
        a = lax.dot_general(qh, kh, (((1,), (1,)), ((), ())),
                            preferred_element_type=f32)               # (C, C)
        a = jnp.where(causal, a, 0.0)

        # Numerator: intra-chunk contribution + carry from previous chunks (MXU).
        num = (jnp.dot(a, vh, preferred_element_type=f32)
               + jnp.dot(qh, s_prev, preferred_element_type=f32))     # (C, D)
        # Denominator phi(q_t).Z_t + eps, computed once per chunk.
        denom = (jnp.sum(a, axis=1, keepdims=True)
                 + jnp.sum(qh * z_prev, axis=1, keepdims=True) + eps)  # (C, 1)
        attn_heads.append(num * pl.reciprocal(denom, approx=False))

        # State update once per chunk: S += phi(K)^T V ; Z += sum_t phi(k_t).
        s_ref[h] = s_prev + lax.dot_general(kh, vh, (((0,), (0,)), ((), ())),
                                            preferred_element_type=f32)
        z_ref[h] = z_prev + jnp.sum(kf[:, sl], axis=0, keepdims=True)

    # Lane-dense (C, d_model) chunk value; fuse the output projection per chunk.
    attn = jnp.concatenate(attn_heads, axis=1)
    out_ref[...] = (jnp.dot(attn.astype(bf16), wo_ref[...],
                            preferred_element_type=f32) + bo_ref[...])


def _shared_qkv_kernel(x_ref, *rest, **static):
    # Self-attention fast path: one activation block DMA'd per chunk, reused for
    # the q/k/v projections (querys is keys is values).
    _linear_attn_chunk(x_ref, x_ref, x_ref, *rest, **static)


def recurrent_self_attention(xq, xk, xv, params, *, n_heads, eps=1e-6,
                             chunk_size=256):
    B, L, dm = xq.shape
    assert dm % n_heads == 0
    D = dm // n_heads
    scaling = float(D) ** -0.5

    # Chunk length: multiple of 8 (sublane), no larger than (padded) L.
    C = max(8, min(chunk_size, ((L + 7) // 8) * 8))
    C = (C // 8) * 8
    L_pad = pl.cdiv(L, C) * C
    n_chunks = L_pad // C

    shared_qkv = (xq is xk) and (xk is xv)

    def pad_seq(x):
        # Zero-padding at the end of the sequence is safe: padded keys only
        # influence padded (discarded) outputs under the causal recurrence, and
        # padding only ever extends the *last* chunk so the contaminated state
        # update is never consumed.
        if L_pad == L:
            return x
        return jnp.pad(x, ((0, 0), (0, L_pad - L), (0, 0)))

    bf16 = jnp.bfloat16
    wq = params["wq"].astype(bf16)
    wk = params["wk"].astype(bf16)
    wv = params["wv"].astype(bf16)
    wo = params["wo"].astype(bf16)

    static = dict(n_heads=n_heads, head_dim=D, scaling=scaling, eps=eps)

    act_spec = pl.BlockSpec((None, C, dm), lambda b, c: (b, c, 0))
    # Grid-invariant weights/biases: constant index map -> fetched once, not per step.
    w_spec = pl.BlockSpec((dm, dm), lambda b, c: (0, 0))
    b_spec = pl.BlockSpec((1, dm), lambda b, c: (0, 0))

    weight_args = (wq, params["bq"], wk, params["bk"],
                   wv, params["bv"], wo, params["bo"])
    weight_specs = [w_spec, b_spec] * 4

    if shared_qkv:
        kernel = functools.partial(_shared_qkv_kernel, **static)
        in_specs = [act_spec] + weight_specs
        act_args = (pad_seq(xq),)
    else:
        kernel = functools.partial(_linear_attn_chunk, **static)
        in_specs = [act_spec, act_spec, act_spec] + weight_specs
        act_args = (pad_seq(xq), pad_seq(xk), pad_seq(xv))

    out = pl.pallas_call(
        kernel,
        out_shape=jax.ShapeDtypeStruct((B, L_pad, dm), jnp.float32),
        grid_spec=pltpu.PrefetchScalarGridSpec(
            num_scalar_prefetch=0,
            grid=(B, n_chunks),
            in_specs=in_specs,
            out_specs=act_spec,
            scratch_shapes=[
                pltpu.VMEM((n_heads, D, D), jnp.float32),   # S, per head
                pltpu.VMEM((n_heads, 1, D), jnp.float32),   # Z, per head
            ],
        ),
        compiler_params=pltpu.CompilerParams(
            dimension_semantics=("parallel", "arbitrary"),
        ),
    )(*act_args, *weight_args)
    return out[:, :L, :]


def reference(xq, xk, xv, params, *, n_heads, eps=1e-6):
    """Pure-JAX reference mirroring the PyTorch forward (bf16-rounded weights/acts
    for the linear projections to match the kernel's bf16 MXU path)."""
    B, L, dm = xq.shape
    D = dm // n_heads
    H = n_heads
    f32 = jnp.float32
    bf16 = jnp.bfloat16

    def mm(x, w):
        return jnp.dot(x.astype(bf16).astype(f32), w.astype(bf16).astype(f32))

    q = mm(xq, params["wq"]) + params["bq"]
    k = mm(xk, params["wk"]) + params["bk"]
    v = mm(xv, params["wv"]) + params["bv"]
    q = q * (float(D) ** -0.5)
    qf = _elu_plus_one(q).reshape(B, L, H, D)
    kf = _elu_plus_one(k).reshape(B, L, H, D)
    vv = v.reshape(B, L, H, D)
    S = jnp.zeros((B, H, D, D), f32)
    Z = jnp.zeros((B, H, D), f32)
    outs = []
    for t in range(L):
        S = S + jnp.einsum("bhd,bhm->bhdm", kf[:, t], vv[:, t])
        Z = Z + kf[:, t]
        denom = jnp.einsum("bhd,bhd->bh", qf[:, t], Z) + eps
        num = jnp.einsum("bhd,bhdm->bhm", qf[:, t], S)
        outs.append(num / denom[..., None])
    attn = jnp.stack(outs, axis=1).reshape(B, L, dm)
    return mm(attn, params["wo"]) + params["bo"]


def init_params(key, d_model):
    ks = jax.random.split(key, 8)
    scale = 1.0 / jnp.sqrt(jnp.float32(d_model))

    def w(k):  # stored as (d_in, d_out) == torch W.T
        return jax.random.normal(k, (d_model, d_model), jnp.float32) * scale

    def b(k):
        return jax.random.normal(k, (1, d_model), jnp.float32) * 0.01

    return {
        "wq": w(ks[0]), "bq": b(ks[1]),
        "wk": w(ks[2]), "bk": b(ks[3]),
        "wv": w(ks[4]), "bv": b(ks[5]),
        "wo": w(ks[6]), "bo": b(ks[7]),
    }


if __name__ == "__main__":
    B, L, d_model, n_heads = 2, 8, 32, 4

    key = jax.random.PRNGKey(0)
    k_x, k_x2, k_k, k_v, k_p = jax.random.split(key, 5)
    x = jax.random.normal(k_x, (B, L, d_model), jnp.float32)
    params = init_params(k_p, d_model)

    # 1) self-attention fast path: querys is keys is values (single chunk).
    out = recurrent_self_attention(x, x, x, params, n_heads=n_heads)
    out = jax.block_until_ready(out)
    ref = reference(x, x, x, params, n_heads=n_heads)
    assert out.shape == (B, L, d_model)
    assert jnp.allclose(out, ref, atol=2e-3, rtol=2e-3), (
        f"max abs err {jnp.max(jnp.abs(out - ref))}"
    )

    # 2) multi-chunk config: exercises the carried (S, Z) state across the chunk
    #    grid axis and the end-of-sequence padding path (L=20 -> 3 chunks of 8).
    L2 = 20
    x2 = jax.random.normal(k_x2, (B, L2, d_model), jnp.float32)
    out2 = recurrent_self_attention(x2, x2, x2, params, n_heads=n_heads,
                                    chunk_size=8)
    out2 = jax.block_until_ready(out2)
    ref2 = reference(x2, x2, x2, params, n_heads=n_heads)
    assert out2.shape == (B, L2, d_model)
    assert jnp.allclose(out2, ref2, atol=2e-3, rtol=2e-3), (
        f"max abs err {jnp.max(jnp.abs(out2 - ref2))}"
    )

    # 3) distinct q/k/v tensors: exercises the general (3-input) kernel path.
    xk3 = jax.random.normal(k_k, (B, L, d_model), jnp.float32)
    xv3 = jax.random.normal(k_v, (B, L, d_model), jnp.float32)
    out3 = recurrent_self_attention(x, xk3, xv3, params, n_heads=n_heads)
    out3 = jax.block_until_ready(out3)
    ref3 = reference(x, xk3, xv3, params, n_heads=n_heads)
    assert out3.shape == (B, L, d_model)
    assert jnp.allclose(out3, ref3, atol=2e-3, rtol=2e-3), (
        f"max abs err {jnp.max(jnp.abs(out3 - ref3))}"
    )

    print("KERNEL_OK")
</pallas_src>

<mosaic_0001>
module attributes {stable_mosaic.version = 11 : i64} {
  func.func @_shared_qkv_kernel(%arg0: i32, %arg1: i32, %arg2: memref<1x8x32xf32, #tpu.memory_space<vmem>>, %arg3: memref<32x32xbf16, #tpu.memory_space<vmem>>, %arg4: memref<1x32xf32, #tpu.memory_space<vmem>>, %arg5: memref<32x32xbf16, #tpu.memory_space<vmem>>, %arg6: memref<1x32xf32, #tpu.memory_space<vmem>>, %arg7: memref<32x32xbf16, #tpu.memory_space<vmem>>, %arg8: memref<1x32xf32, #tpu.memory_space<vmem>>, %arg9: memref<32x32xbf16, #tpu.memory_space<vmem>>, %arg10: memref<1x32xf32, #tpu.memory_space<vmem>>, %arg11: memref<1x8x32xf32, #tpu.memory_space<vmem>>, %arg12: memref<4x8x8xf32, #tpu.memory_space<vmem>>, %arg13: memref<4x1x8xf32, #tpu.memory_space<vmem>>) attributes {dimension_semantics = [#tpu.dimension_semantics<parallel>, #tpu.dimension_semantics<arbitrary>], iteration_bounds = array<i64: 2, 1>, scalar_prefetch = 0 : i64, scratch_operands = 2 : i64, tpu.core_type = #tpu.core_type<tc>, window_params = [{transform_indices = @transform_0, window_bounds = array<i64: 1, 8, 32>}, {pipeline_mode = #tpu.pipeline_mode<synchronous>, transform_indices = @transform_1, window_bounds = array<i64: 32, 32>}, {pipeline_mode = #tpu.pipeline_mode<synchronous>, transform_indices = @transform_2, window_bounds = array<i64: 1, 32>}, {pipeline_mode = #tpu.pipeline_mode<synchronous>, transform_indices = @transform_3, window_bounds = array<i64: 32, 32>}, {pipeline_mode = #tpu.pipeline_mode<synchronous>, transform_indices = @transform_4, window_bounds = array<i64: 1, 32>}, {pipeline_mode = #tpu.pipeline_mode<synchronous>, transform_indices = @transform_5, window_bounds = array<i64: 32, 32>}, {pipeline_mode = #tpu.pipeline_mode<synchronous>, transform_indices = @transform_6, window_bounds = array<i64: 1, 32>}, {pipeline_mode = #tpu.pipeline_mode<synchronous>, transform_indices = @transform_7, window_bounds = array<i64: 32, 32>}, {pipeline_mode = #tpu.pipeline_mode<synchronous>, transform_indices = @transform_8, window_bounds = array<i64: 1, 32>}, {transform_indices = @transform_9, window_bounds = array<i64: 1, 8, 32>}]} {
    %c0_i32 = arith.constant 0 : i32
    %0 = arith.cmpi eq, %arg1, %c0_i32 : i32
    %1 = arith.extui %0 : i1 to i32
    %c0_i32_0 = arith.constant 0 : i32
    %2 = arith.cmpi ne, %1, %c0_i32_0 : i32
    scf.if %2 {
      %cst_119 = arith.constant 0.000000e+00 : f32
      %206 = vector.broadcast %cst_119 : f32 to vector<4x8x8xf32>
      %c0_120 = arith.constant 0 : index
      %c0_121 = arith.constant 0 : index
      %c0_122 = arith.constant 0 : index
      %207 = vector.load %arg12[%c0_120, %c0_121, %c0_122] : memref<4x8x8xf32, #tpu.memory_space<vmem>>, vector<4x8x8xf32>
      tpu.vector_store %arg12[%c0_120, %c0_121, %c0_122], %206 {strides = array<i32>} : memref<4x8x8xf32, #tpu.memory_space<vmem>>, vector<4x8x8xf32>,
      %cst_123 = arith.constant 0.000000e+00 : f32
      %208 = vector.broadcast %cst_123 : f32 to vector<4x1x8xf32>
      %c0_124 = arith.constant 0 : index
      %c0_125 = arith.constant 0 : index
      %c0_126 = arith.constant 0 : index
      %209 = vector.load %arg13[%c0_124, %c0_125, %c0_126] : memref<4x1x8xf32, #tpu.memory_space<vmem>>, vector<4x1x8xf32>
      tpu.vector_store %arg13[%c0_124, %c0_125, %c0_126], %208 {strides = array<i32>} : memref<4x1x8xf32, #tpu.memory_space<vmem>>, vector<4x1x8xf32>,
    } else {
    }
    %c0 = arith.constant 0 : index
    %c0_1 = arith.constant 0 : index
    %c0_2 = arith.constant 0 : index
    %3 = vector.load %arg2[%c0, %c0_1, %c0_2] : memref<1x8x32xf32, #tpu.memory_space<vmem>>, vector<1x8x32xf32>
    %4 = vector.shape_cast %3 : vector<1x8x32xf32> to vector<8x32xf32>
    %5 = arith.truncf %4 : vector<8x32xf32> to vector<8x32xbf16>
    %c0_3 = arith.constant 0 : index
    %c0_4 = arith.constant 0 : index
    %6 = vector.load %arg3[%c0_3, %c0_4] : memref<32x32xbf16, #tpu.memory_space<vmem>>, vector<32x32xbf16>
    %cst = arith.constant dense<0.000000e+00> : vector<8x32xf32>
    %7 = tpu.matmul %5, %6, %cst {dimension_numbers = #tpu.dot_dimension_numbers<[1], [0], [0], [1], [0, 0, 1, 1], [], []>} : vector<8x32xbf16>, vector<32x32xbf16>, vector<8x32xf32> -> vector<8x32xf32>
    %c0_5 = arith.constant 0 : index
    %c0_6 = arith.constant 0 : index
    %8 = vector.load %arg4[%c0_5, %c0_6] : memref<1x32xf32, #tpu.memory_space<vmem>>, vector<1x32xf32>
    %9 = vector.broadcast %8 : vector<1x32xf32> to vector<8x32xf32>
    %10 = arith.addf %7, %9 : vector<8x32xf32>
    %c0_7 = arith.constant 0 : index
    %c0_8 = arith.constant 0 : index
    %c0_9 = arith.constant 0 : index
    %11 = vector.load %arg2[%c0_7, %c0_8, %c0_9] : memref<1x8x32xf32, #tpu.memory_space<vmem>>, vector<1x8x32xf32>
    %12 = vector.shape_cast %11 : vector<1x8x32xf32> to vector<8x32xf32>
    %13 = arith.truncf %12 : vector<8x32xf32> to vector<8x32xbf16>
    %c0_10 = arith.constant 0 : index
    %c0_11 = arith.constant 0 : index
    %14 = vector.load %arg5[%c0_10, %c0_11] : memref<32x32xbf16, #tpu.memory_space<vmem>>, vector<32x32xbf16>
    %cst_12 = arith.constant dense<0.000000e+00> : vector<8x32xf32>
    %15 = tpu.matmul %13, %14, %cst_12 {dimension_numbers = #tpu.dot_dimension_numbers<[1], [0], [0], [1], [0, 0, 1, 1], [], []>} : vector<8x32xbf16>, vector<32x32xbf16>, vector<8x32xf32> -> vector<8x32xf32>
    %c0_13 = arith.constant 0 : index
    %c0_14 = arith.constant 0 : index
    %16 = vector.load %arg6[%c0_13, %c0_14] : memref<1x32xf32, #tpu.memory_space<vmem>>, vector<1x32xf32>
    %17 = vector.broadcast %16 : vector<1x32xf32> to vector<8x32xf32>
    %18 = arith.addf %15, %17 : vector<8x32xf32>
    %c0_15 = arith.constant 0 : index
    %c0_16 = arith.constant 0 : index
    %c0_17 = arith.constant 0 : index
    %19 = vector.load %arg2[%c0_15, %c0_16, %c0_17] : memref<1x8x32xf32, #tpu.memory_space<vmem>>, vector<1x8x32xf32>
    %20 = vector.shape_cast %19 : vector<1x8x32xf32> to vector<8x32xf32>
    %21 = arith.truncf %20 : vector<8x32xf32> to vector<8x32xbf16>
    %c0_18 = arith.constant 0 : index
    %c0_19 = arith.constant 0 : index
    %22 = vector.load %arg7[%c0_18, %c0_19] : memref<32x32xbf16, #tpu.memory_space<vmem>>, vector<32x32xbf16>
    %cst_20 = arith.constant dense<0.000000e+00> : vector<8x32xf32>
    %23 = tpu.matmul %21, %22, %cst_20 {dimension_numbers = #tpu.dot_dimension_numbers<[1], [0], [0], [1], [0, 0, 1, 1], [], []>} : vector<8x32xbf16>, vector<32x32xbf16>, vector<8x32xf32> -> vector<8x32xf32>
    %c0_21 = arith.constant 0 : index
    %c0_22 = arith.constant 0 : index
    %24 = vector.load %arg8[%c0_21, %c0_22] : memref<1x32xf32, #tpu.memory_space<vmem>>, vector<1x32xf32>
    %25 = vector.broadcast %24 : vector<1x32xf32> to vector<8x32xf32>
    %26 = arith.addf %23, %25 : vector<8x32xf32>
    %cst_23 = arith.constant 0.353553385 : f32
    %27 = vector.broadcast %cst_23 : f32 to vector<8x32xf32>
    %28 = arith.mulf %10, %27 : vector<8x32xf32>
    %cst_24 = arith.constant 0.000000e+00 : f32
    %29 = vector.broadcast %cst_24 : f32 to vector<8x32xf32>
    %30 = arith.cmpf ogt, %28, %29 : vector<8x32xf32>
    %cst_25 = arith.constant 1.000000e+00 : f32
    %31 = vector.broadcast %cst_25 : f32 to vector<8x32xf32>
    %32 = arith.addf %28, %31 : vector<8x32xf32>
    %cst_26 = arith.constant 0.000000e+00 : f32
    %33 = vector.broadcast %cst_26 : f32 to vector<8x32xf32>
    %34 = arith.minimumf %28, %33 : vector<8x32xf32>
    %35 = math.exp %34 : vector<8x32xf32>
    %36 = arith.select %30, %32, %35 : vector<8x32xi1>, vector<8x32xf32>
    %cst_27 = arith.constant 0.000000e+00 : f32
    %37 = vector.broadcast %cst_27 : f32 to vector<8x32xf32>
    %38 = arith.cmpf ogt, %18, %37 : vector<8x32xf32>
    %cst_28 = arith.constant 1.000000e+00 : f32
    %39 = vector.broadcast %cst_28 : f32 to vector<8x32xf32>
    %40 = arith.addf %18, %39 : vector<8x32xf32>
    %cst_29 = arith.constant 0.000000e+00 : f32
    %41 = vector.broadcast %cst_29 : f32 to vector<8x32xf32>
    %42 = arith.minimumf %18, %41 : vector<8x32xf32>
    %43 = math.exp %42 : vector<8x32xf32>
    %44 = arith.select %38, %40, %43 : vector<8x32xi1>, vector<8x32xf32>
    %45 = tpu.iota {dimensions = array<i32: 0>} : vector<8x8xi32>
    %46 = tpu.iota {dimensions = array<i32: 1>} : vector<8x8xi32>
    %47 = arith.cmpi sge, %45, %46 : vector<8x8xi32>
    %48 = vector.extract_strided_slice %36 {offsets = [0, 0], sizes = [8, 8], strides = [1, 1]} : vector<8x32xf32> to vector<8x8xf32>
    %49 = vector.extract_strided_slice %44 {offsets = [0, 0], sizes = [8, 8], strides = [1, 1]} : vector<8x32xf32> to vector<8x8xf32>
    %50 = vector.extract_strided_slice %26 {offsets = [0, 0], sizes = [8, 8], strides = [1, 1]} : vector<8x32xf32> to vector<8x8xf32>
    %c0_30 = arith.constant 0 : index
    %c0_31 = arith.constant 0 : index
    %c0_32 = arith.constant 0 : index
    %51 = vector.load %arg12[%c0_30, %c0_31, %c0_32] : memref<4x8x8xf32, #tpu.memory_space<vmem>>, vector<1x8x8xf32>
    %52 = vector.shape_cast %51 : vector<1x8x8xf32> to vector<8x8xf32>
    %c0_33 = arith.constant 0 : index
    %c0_34 = arith.constant 0 : index
    %c0_35 = arith.constant 0 : index
    %53 = vector.load %arg13[%c0_33, %c0_34, %c0_35] : memref<4x1x8xf32, #tpu.memory_space<vmem>>, vector<1x1x8xf32>
    %54 = vector.shape_cast %53 : vector<1x1x8xf32> to vector<1x8xf32>
    %cst_36 = arith.constant dense<0.000000e+00> : vector<8x8xf32>
    %55 = tpu.matmul %48, %49, %cst_36 {dimension_numbers = #tpu.dot_dimension_numbers<[1], [1], [0], [0], [0, 0, 1, 0], [], []>} : vector<8x8xf32>, vector<8x8xf32>, vector<8x8xf32> -> vector<8x8xf32>
    %cst_37 = arith.constant 0.000000e+00 : f32
    %56 = vector.broadcast %cst_37 : f32 to vector<8x8xf32>
    %57 = arith.select %47, %55, %56 : vector<8x8xi1>, vector<8x8xf32>
    %cst_38 = arith.constant dense<0.000000e+00> : vector<8x8xf32>
    %58 = tpu.matmul %57, %50, %cst_38 {dimension_numbers = #tpu.dot_dimension_numbers<[1], [0], [0], [1], [0, 0, 1, 1], [], []>} : vector<8x8xf32>, vector<8x8xf32>, vector<8x8xf32> -> vector<8x8xf32>
    %cst_39 = arith.constant dense<0.000000e+00> : vector<8x8xf32>
    %59 = tpu.matmul %48, %52, %cst_39 {dimension_numbers = #tpu.dot_dimension_numbers<[1], [0], [0], [1], [0, 0, 1, 1], [], []>} : vector<8x8xf32>, vector<8x8xf32>, vector<8x8xf32> -> vector<8x8xf32>
    %60 = arith.addf %58, %59 : vector<8x8xf32>
    %cst_40 = arith.constant dense<0.000000e+00> : vector<8xf32>
    %61 = vector.multi_reduction <add>, %57, %cst_40 [1] : vector<8x8xf32> to vector<8xf32>
    %62 = vector.shape_cast %61 : vector<8xf32> to vector<8x1xf32>
    %63 = vector.broadcast %54 : vector<1x8xf32> to vector<8x8xf32>
    %64 = arith.mulf %48, %63 : vector<8x8xf32>
    %cst_41 = arith.constant dense<0.000000e+00> : vector<8xf32>
    %65 = vector.multi_reduction <add>, %64, %cst_41 [1] : vector<8x8xf32> to vector<8xf32>
    %66 = vector.shape_cast %65 : vector<8xf32> to vector<8x1xf32>
    %67 = arith.addf %62, %66 : vector<8x1xf32>
    %cst_42 = arith.constant 9.99999997E-7 : f32
    %68 = vector.broadcast %cst_42 : f32 to vector<8x1xf32>
    %69 = arith.addf %67, %68 : vector<8x1xf32>
    %70 = tpu.reciprocal %69 : vector<8x1xf32> -> vector<8x1xf32>
    %71 = vector.broadcast %70 : vector<8x1xf32> to vector<8x8xf32>
    %72 = arith.mulf %60, %71 : vector<8x8xf32>
    %cst_43 = arith.constant dense<0.000000e+00> : vector<8x8xf32>
    %73 = tpu.matmul %49, %50, %cst_43 {dimension_numbers = #tpu.dot_dimension_numbers<[0], [0], [1], [1], [0, 1, 1, 1], [], []>} : vector<8x8xf32>, vector<8x8xf32>, vector<8x8xf32> -> vector<8x8xf32>
    %74 = arith.addf %52, %73 : vector<8x8xf32>
    %c0_44 = arith.constant 0 : index
    %c0_45 = arith.constant 0 : index
    %c0_46 = arith.constant 0 : index
    %75 = vector.load %arg12[%c0_44, %c0_45, %c0_46] : memref<4x8x8xf32, #tpu.memory_space<vmem>>, vector<1x8x8xf32>
    %76 = vector.shape_cast %75 : vector<1x8x8xf32> to vector<8x8xf32>
    %77 = vector.shape_cast %74 : vector<8x8xf32> to vector<1x8x8xf32>
    tpu.vector_store %arg12[%c0_44, %c0_45, %c0_46], %77 {strides = array<i32>} : memref<4x8x8xf32, #tpu.memory_space<vmem>>, vector<1x8x8xf32>,
    %78 = vector.extract_strided_slice %44 {offsets = [0, 0], sizes = [8, 8], strides = [1, 1]} : vector<8x32xf32> to vector<8x8xf32>
    %cst_47 = arith.constant dense<0.000000e+00> : vector<8xf32>
    %79 = vector.multi_reduction <add>, %78, %cst_47 [0] : vector<8x8xf32> to vector<8xf32>
    %80 = vector.shape_cast %79 : vector<8xf32> to vector<1x8xf32>
    %81 = arith.addf %54, %80 : vector<1x8xf32>
    %c0_48 = arith.constant 0 : index
    %c0_49 = arith.constant 0 : index
    %c0_50 = arith.constant 0 : index
    %82 = vector.load %arg13[%c0_48, %c0_49, %c0_50] : memref<4x1x8xf32, #tpu.memory_space<vmem>>, vector<1x1x8xf32>
    %83 = vector.shape_cast %82 : vector<1x1x8xf32> to vector<1x8xf32>
    %84 = vector.shape_cast %81 : vector<1x8xf32> to vector<1x1x8xf32>
    tpu.vector_store %arg13[%c0_48, %c0_49, %c0_50], %84 {strides = array<i32>} : memref<4x1x8xf32, #tpu.memory_space<vmem>>, vector<1x1x8xf32>,
    %85 = vector.extract_strided_slice %36 {offsets = [0, 8], sizes = [8, 8], strides = [1, 1]} : vector<8x32xf32> to vector<8x8xf32>
    %86 = vector.extract_strided_slice %44 {offsets = [0, 8], sizes = [8, 8], strides = [1, 1]} : vector<8x32xf32> to vector<8x8xf32>
    %87 = vector.extract_strided_slice %26 {offsets = [0, 8], sizes = [8, 8], strides = [1, 1]} : vector<8x32xf32> to vector<8x8xf32>
    %c1 = arith.constant 1 : index
    %c0_51 = arith.constant 0 : index
    %c0_52 = arith.constant 0 : index
    %88 = vector.load %arg12[%c1, %c0_51, %c0_52] : memref<4x8x8xf32, #tpu.memory_space<vmem>>, vector<1x8x8xf32>
    %89 = vector.shape_cast %88 : vector<1x8x8xf32> to vector<8x8xf32>
    %c1_53 = arith.constant 1 : index
    %c0_54 = arith.constant 0 : index
    %c0_55 = arith.constant 0 : index
    %90 = vector.load %arg13[%c1_53, %c0_54, %c0_55] : memref<4x1x8xf32, #tpu.memory_space<vmem>>, vector<1x1x8xf32>
    %91 = vector.shape_cast %90 : vector<1x1x8xf32> to vector<1x8xf32>
    %cst_56 = arith.constant dense<0.000000e+00> : vector<8x8xf32>
    %92 = tpu.matmul %85, %86, %cst_56 {dimension_numbers = #tpu.dot_dimension_numbers<[1], [1], [0], [0], [0, 0, 1, 0], [], []>} : vector<8x8xf32>, vector<8x8xf32>, vector<8x8xf32> -> vector<8x8xf32>
    %cst_57 = arith.constant 0.000000e+00 : f32
    %93 = vector.broadcast %cst_57 : f32 to vector<8x8xf32>
    %94 = arith.select %47, %92, %93 : vector<8x8xi1>, vector<8x8xf32>
    %cst_58 = arith.constant dense<0.000000e+00> : vector<8x8xf32>
    %95 = tpu.matmul %94, %87, %cst_58 {dimension_numbers = #tpu.dot_dimension_numbers<[1], [0], [0], [1], [0, 0, 1, 1], [], []>} : vector<8x8xf32>, vector<8x8xf32>, vector<8x8xf32> -> vector<8x8xf32>
    %cst_59 = arith.constant dense<0.000000e+00> : vector<8x8xf32>
    %96 = tpu.matmul %85, %89, %cst_59 {dimension_numbers = #tpu.dot_dimension_numbers<[1], [0], [0], [1], [0, 0, 1, 1], [], []>} : vector<8x8xf32>, vector<8x8xf32>, vector<8x8xf32> -> vector<8x8xf32>
    %97 = arith.addf %95, %96 : vector<8x8xf32>
    %cst_60 = arith.constant dense<0.000000e+00> : vector<8xf32>
    %98 = vector.multi_reduction <add>, %94, %cst_60 [1] : vector<8x8xf32> to vector<8xf32>
    %99 = vector.shape_cast %98 : vector<8xf32> to vector<8x1xf32>
    %100 = vector.broadcast %91 : vector<1x8xf32> to vector<8x8xf32>
    %101 = arith.mulf %85, %100 : vector<8x8xf32>
    %cst_61 = arith.constant dense<0.000000e+00> : vector<8xf32>
    %102 = vector.multi_reduction <add>, %101, %cst_61 [1] : vector<8x8xf32> to vector<8xf32>
    %103 = vector.shape_cast %102 : vector<8xf32> to vector<8x1xf32>
    %104 = arith.addf %99, %103 : vector<8x1xf32>
    %cst_62 = arith.constant 9.99999997E-7 : f32
    %105 = vector.broadcast %cst_62 : f32 to vector<8x1xf32>
    %106 = arith.addf %104, %105 : vector<8x1xf32>
    %107 = tpu.reciprocal %106 : vector<8x1xf32> -> vector<8x1xf32>
    %108 = vector.broadcast %107 : vector<8x1xf32> to vector<8x8xf32>
    %109 = arith.mulf %97, %108 : vector<8x8xf32>
    %cst_63 = arith.constant dense<0.000000e+00> : vector<8x8xf32>
    %110 = tpu.matmul %86, %87, %cst_63 {dimension_numbers = #tpu.dot_dimension_numbers<[0], [0], [1], [1], [0, 1, 1, 1], [], []>} : vector<8x8xf32>, vector<8x8xf32>, vector<8x8xf32> -> vector<8x8xf32>
    %111 = arith.addf %89, %110 : vector<8x8xf32>
    %c1_64 = arith.constant 1 : index
    %c0_65 = arith.constant 0 : index
    %c0_66 = arith.constant 0 : index
    %112 = vector.load %arg12[%c1_64, %c0_65, %c0_66] : memref<4x8x8xf32, #tpu.memory_space<vmem>>, vector<1x8x8xf32>
    %113 = vector.shape_cast %112 : vector<1x8x8xf32> to vector<8x8xf32>
    %114 = vector.shape_cast %111 : vector<8x8xf32> to vector<1x8x8xf32>
    tpu.vector_store %arg12[%c1_64, %c0_65, %c0_66], %114 {strides = array<i32>} : memref<4x8x8xf32, #tpu.memory_space<vmem>>, vector<1x8x8xf32>,
    %115 = vector.extract_strided_slice %44 {offsets = [0, 8], sizes = [8, 8], strides = [1, 1]} : vector<8x32xf32> to vector<8x8xf32>
    %cst_67 = arith.constant dense<0.000000e+00> : vector<8xf32>
    %116 = vector.multi_reduction <add>, %115, %cst_67 [0] : vector<8x8xf32> to vector<8xf32>
    %117 = vector.shape_cast %116 : vector<8xf32> to vector<1x8xf32>
    %118 = arith.addf %91, %117 : vector<1x8xf32>
    %c1_68 = arith.constant 1 : index
    %c0_69 = arith.constant 0 : index
    %c0_70 = arith.constant 0 : index
    %119 = vector.load %arg13[%c1_68, %c0_69, %c0_70] : memref<4x1x8xf32, #tpu.memory_space<vmem>>, vector<1x1x8xf32>
    %120 = vector.shape_cast %119 : vector<1x1x8xf32> to vector<1x8xf32>
    %121 = vector.shape_cast %118 : vector<1x8xf32> to vector<1x1x8xf32>
    tpu.vector_store %arg13[%c1_68, %c0_69, %c0_70], %121 {strides = array<i32>} : memref<4x1x8xf32, #tpu.memory_space<vmem>>, vector<1x1x8xf32>,
    %122 = vector.extract_strided_slice %36 {offsets = [0, 16], sizes = [8, 8], strides = [1, 1]} : vector<8x32xf32> to vector<8x8xf32>
    %123 = vector.extract_strided_slice %44 {offsets = [0, 16], sizes = [8, 8], strides = [1, 1]} : vector<8x32xf32> to vector<8x8xf32>
    %124 = vector.extract_strided_slice %26 {offsets = [0, 16], sizes = [8, 8], strides = [1, 1]} : vector<8x32xf32> to vector<8x8xf32>
    %c2 = arith.constant 2 : index
    %c0_71 = arith.constant 0 : index
    %c0_72 = arith.constant 0 : index
    %125 = vector.load %arg12[%c2, %c0_71, %c0_72] : memref<4x8x8xf32, #tpu.memory_space<vmem>>, vector<1x8x8xf32>
    %126 = vector.shape_cast %125 : vector<1x8x8xf32> to vector<8x8xf32>
    %c2_73 = arith.constant 2 : index
    %c0_74 = arith.constant 0 : index
    %c0_75 = arith.constant 0 : index
    %127 = vector.load %arg13[%c2_73, %c0_74, %c0_75] : memref<4x1x8xf32, #tpu.memory_space<vmem>>, vector<1x1x8xf32>
    %128 = vector.shape_cast %127 : vector<1x1x8xf32> to vector<1x8xf32>
    %cst_76 = arith.constant dense<0.000000e+00> : vector<8x8xf32>
    %129 = tpu.matmul %122, %123, %cst_76 {dimension_numbers = #tpu.dot_dimension_numbers<[1], [1], [0], [0], [0, 0, 1, 0], [], []>} : vector<8x8xf32>, vector<8x8xf32>, vector<8x8xf32> -> vector<8x8xf32>
    %cst_77 = arith.constant 0.000000e+00 : f32
    %130 = vector.broadcast %cst_77 : f32 to vector<8x8xf32>
    %131 = arith.select %47, %129, %130 : vector<8x8xi1>, vector<8x8xf32>
    %cst_78 = arith.constant dense<0.000000e+00> : vector<8x8xf32>
    %132 = tpu.matmul %131, %124, %cst_78 {dimension_numbers = #tpu.dot_dimension_numbers<[1], [0], [0], [1], [0, 0, 1, 1], [], []>} : vector<8x8xf32>, vector<8x8xf32>, vector<8x8xf32> -> vector<8x8xf32>
    %cst_79 = arith.constant dense<0.000000e+00> : vector<8x8xf32>
    %133 = tpu.matmul %122, %126, %cst_79 {dimension_numbers = #tpu.dot_dimension_numbers<[1], [0], [0], [1], [0, 0, 1, 1], [], []>} : vector<8x8xf32>, vector<8x8xf32>, vector<8x8xf32> -> vector<8x8xf32>
    %134 = arith.addf %132, %133 : vector<8x8xf32>
    %cst_80 = arith.constant dense<0.000000e+00> : vector<8xf32>
    %135 = vector.multi_reduction <add>, %131, %cst_80 [1] : vector<8x8xf32> to vector<8xf32>
    %136 = vector.shape_cast %135 : vector<8xf32> to vector<8x1xf32>
    %137 = vector.broadcast %128 : vector<1x8xf32> to vector<8x8xf32>
    %138 = arith.mulf %122, %137 : vector<8x8xf32>
    %cst_81 = arith.constant dense<0.000000e+00> : vector<8xf32>
    %139 = vector.multi_reduction <add>, %138, %cst_81 [1] : vector<8x8xf32> to vector<8xf32>
    %140 = vector.shape_cast %139 : vector<8xf32> to vector<8x1xf32>
    %141 = arith.addf %136, %140 : vector<8x1xf32>
    %cst_82 = arith.constant 9.99999997E-7 : f32
    %142 = vector.broadcast %cst_82 : f32 to vector<8x1xf32>
    %143 = arith.addf %141, %142 : vector<8x1xf32>
    %144 = tpu.reciprocal %143 : vector<8x1xf32> -> vector<8x1xf32>
    %145 = vector.broadcast %144 : vector<8x1xf32> to vector<8x8xf32>
    %146 = arith.mulf %134, %145 : vector<8x8xf32>
    %cst_83 = arith.constant dense<0.000000e+00> : vector<8x8xf32>
    %147 = tpu.matmul %123, %124, %cst_83 {dimension_numbers = #tpu.dot_dimension_numbers<[0], [0], [1], [1], [0, 1, 1, 1], [], []>} : vector<8x8xf32>, vector<8x8xf32>, vector<8x8xf32> -> vector<8x8xf32>
    %148 = arith.addf %126, %147 : vector<8x8xf32>
    %c2_84 = arith.constant 2 : index
    %c0_85 = arith.constant 0 : index
    %c0_86 = arith.constant 0 : index
    %149 = vector.load %arg12[%c2_84, %c0_85, %c0_86] : memref<4x8x8xf32, #tpu.memory_space<vmem>>, vector<1x8x8xf32>
    %150 = vector.shape_cast %149 : vector<1x8x8xf32> to vector<8x8xf32>
    %151 = vector.shape_cast %148 : vector<8x8xf32> to vector<1x8x8xf32>
    tpu.vector_store %arg12[%c2_84, %c0_85, %c0_86], %151 {strides = array<i32>} : memref<4x8x8xf32, #tpu.memory_space<vmem>>, vector<1x8x8xf32>,
    %152 = vector.extract_strided_slice %44 {offsets = [0, 16], sizes = [8, 8], strides = [1, 1]} : vector<8x32xf32> to vector<8x8xf32>
    %cst_87 = arith.constant dense<0.000000e+00> : vector<8xf32>
    %153 = vector.multi_reduction <add>, %152, %cst_87 [0] : vector<8x8xf32> to vector<8xf32>
    %154 = vector.shape_cast %153 : vector<8xf32> to vector<1x8xf32>
    %155 = arith.addf %128, %154 : vector<1x8xf32>
    %c2_88 = arith.constant 2 : index
    %c0_89 = arith.constant 0 : index
    %c0_90 = arith.constant 0 : index
    %156 = vector.load %arg13[%c2_88, %c0_89, %c0_90] : memref<4x1x8xf32, #tpu.memory_space<vmem>>, vector<1x1x8xf32>
    %157 = vector.shape_cast %156 : vector<1x1x8xf32> to vector<1x8xf32>
    %158 = vector.shape_cast %155 : vector<1x8xf32> to vector<1x1x8xf32>
    tpu.vector_store %arg13[%c2_88, %c0_89, %c0_90], %158 {strides = array<i32>} : memref<4x1x8xf32, #tpu.memory_space<vmem>>, vector<1x1x8xf32>,
    %159 = vector.extract_strided_slice %36 {offsets = [0, 24], sizes = [8, 8], strides = [1, 1]} : vector<8x32xf32> to vector<8x8xf32>
    %160 = vector.extract_strided_slice %44 {offsets = [0, 24], sizes = [8, 8], strides = [1, 1]} : vector<8x32xf32> to vector<8x8xf32>
    %161 = vector.extract_strided_slice %26 {offsets = [0, 24], sizes = [8, 8], strides = [1, 1]} : vector<8x32xf32> to vector<8x8xf32>
    %c3 = arith.constant 3 : index
    %c0_91 = arith.constant 0 : index
    %c0_92 = arith.constant 0 : index
    %162 = vector.load %arg12[%c3, %c0_91, %c0_92] : memref<4x8x8xf32, #tpu.memory_space<vmem>>, vector<1x8x8xf32>
    %163 = vector.shape_cast %162 : vector<1x8x8xf32> to vector<8x8xf32>
    %c3_93 = arith.constant 3 : index
    %c0_94 = arith.constant 0 : index
    %c0_95 = arith.constant 0 : index
    %164 = vector.load %arg13[%c3_93, %c0_94, %c0_95] : memref<4x1x8xf32, #tpu.memory_space<vmem>>, vector<1x1x8xf32>
    %165 = vector.shape_cast %164 : vector<1x1x8xf32> to vector<1x8xf32>
    %cst_96 = arith.constant dense<0.000000e+00> : vector<8x8xf32>
    %166 = tpu.matmul %159, %160, %cst_96 {dimension_numbers = #tpu.dot_dimension_numbers<[1], [1], [0], [0], [0, 0, 1, 0], [], []>} : vector<8x8xf32>, vector<8x8xf32>, vector<8x8xf32> -> vector<8x8xf32>
    %cst_97 = arith.constant 0.000000e+00 : f32
    %167 = vector.broadcast %cst_97 : f32 to vector<8x8xf32>
    %168 = arith.select %47, %166, %167 : vector<8x8xi1>, vector<8x8xf32>
    %cst_98 = arith.constant dense<0.000000e+00> : vector<8x8xf32>
    %169 = tpu.matmul %168, %161, %cst_98 {dimension_numbers = #tpu.dot_dimension_numbers<[1], [0], [0], [1], [0, 0, 1, 1], [], []>} : vector<8x8xf32>, vector<8x8xf32>, vector<8x8xf32> -> vector<8x8xf32>
    %cst_99 = arith.constant dense<0.000000e+00> : vector<8x8xf32>
    %170 = tpu.matmul %159, %163, %cst_99 {dimension_numbers = #tpu.dot_dimension_numbers<[1], [0], [0], [1], [0, 0, 1, 1], [], []>} : vector<8x8xf32>, vector<8x8xf32>, vector<8x8xf32> -> vector<8x8xf32>
    %171 = arith.addf %169, %170 : vector<8x8xf32>
    %cst_100 = arith.constant dense<0.000000e+00> : vector<8xf32>
    %172 = vector.multi_reduction <add>, %168, %cst_100 [1] : vector<8x8xf32> to vector<8xf32>
    %173 = vector.shape_cast %172 : vector<8xf32> to vector<8x1xf32>
    %174 = vector.broadcast %165 : vector<1x8xf32> to vector<8x8xf32>
    %175 = arith.mulf %159, %174 : vector<8x8xf32>
    %cst_101 = arith.constant dense<0.000000e+00> : vector<8xf32>
    %176 = vector.multi_reduction <add>, %175, %cst_101 [1] : vector<8x8xf32> to vector<8xf32>
    %177 = vector.shape_cast %176 : vector<8xf32> to vector<8x1xf32>
    %178 = arith.addf %173, %177 : vector<8x1xf32>
    %cst_102 = arith.constant 9.99999997E-7 : f32
    %179 = vector.broadcast %cst_102 : f32 to vector<8x1xf32>
    %180 = arith.addf %178, %179 : vector<8x1xf32>
    %181 = tpu.reciprocal %180 : vector<8x1xf32> -> vector<8x1xf32>
    %182 = vector.broadcast %181 : vector<8x1xf32> to vector<8x8xf32>
    %183 = arith.mulf %171, %182 : vector<8x8xf32>
    %cst_103 = arith.constant dense<0.000000e+00> : vector<8x8xf32>
    %184 = tpu.matmul %160, %161, %cst_103 {dimension_numbers = #tpu.dot_dimension_numbers<[0], [0], [1], [1], [0, 1, 1, 1], [], []>} : vector<8x8xf32>, vector<8x8xf32>, vector<8x8xf32> -> vector<8x8xf32>
    %185 = arith.addf %163, %184 : vector<8x8xf32>
    %c3_104 = arith.constant 3 : index
    %c0_105 = arith.constant 0 : index
    %c0_106 = arith.constant 0 : index
    %186 = vector.load %arg12[%c3_104, %c0_105, %c0_106] : memref<4x8x8xf32, #tpu.memory_space<vmem>>, vector<1x8x8xf32>
    %187 = vector.shape_cast %186 : vector<1x8x8xf32> to vector<8x8xf32>
    %188 = vector.shape_cast %185 : vector<8x8xf32> to vector<1x8x8xf32>
    tpu.vector_store %arg12[%c3_104, %c0_105, %c0_106], %188 {strides = array<i32>} : memref<4x8x8xf32, #tpu.memory_space<vmem>>, vector<1x8x8xf32>,
    %189 = vector.extract_strided_slice %44 {offsets = [0, 24], sizes = [8, 8], strides = [1, 1]} : vector<8x32xf32> to vector<8x8xf32>
    %cst_107 = arith.constant dense<0.000000e+00> : vector<8xf32>
    %190 = vector.multi_reduction <add>, %189, %cst_107 [0] : vector<8x8xf32> to vector<8xf32>
    %191 = vector.shape_cast %190 : vector<8xf32> to vector<1x8xf32>
    %192 = arith.addf %165, %191 : vector<1x8xf32>
    %c3_108 = arith.constant 3 : index
    %c0_109 = arith.constant 0 : index
    %c0_110 = arith.constant 0 : index
    %193 = vector.load %arg13[%c3_108, %c0_109, %c0_110] : memref<4x1x8xf32, #tpu.memory_space<vmem>>, vector<1x1x8xf32>
    %194 = vector.shape_cast %193 : vector<1x1x8xf32> to vector<1x8xf32>
    %195 = vector.shape_cast %192 : vector<1x8xf32> to vector<1x1x8xf32>
    tpu.vector_store %arg13[%c3_108, %c0_109, %c0_110], %195 {strides = array<i32>} : memref<4x1x8xf32, #tpu.memory_space<vmem>>, vector<1x1x8xf32>,
    %196 = tpu.concatenate %72, %109, %146, %183 in 1 : vector<8x8xf32>, vector<8x8xf32>, vector<8x8xf32>, vector<8x8xf32> -> vector<8x32xf32>
    %197 = arith.truncf %196 : vector<8x32xf32> to vector<8x32xbf16>
    %c0_111 = arith.constant 0 : index
    %c0_112 = arith.constant 0 : index
    %198 = vector.load %arg9[%c0_111, %c0_112] : memref<32x32xbf16, #tpu.memory_space<vmem>>, vector<32x32xbf16>
    %cst_113 = arith.constant dense<0.000000e+00> : vector<8x32xf32>
    %199 = tpu.matmul %197, %198, %cst_113 {dimension_numbers = #tpu.dot_dimension_numbers<[1], [0], [0], [1], [0, 0, 1, 1], [], []>} : vector<8x32xbf16>, vector<32x32xbf16>, vector<8x32xf32> -> vector<8x32xf32>
    %c0_114 = arith.constant 0 : index
    %c0_115 = arith.constant 0 : index
    %200 = vector.load %arg10[%c0_114, %c0_115] : memref<1x32xf32, #tpu.memory_space<vmem>>, vector<1x32xf32>
    %201 = vector.broadcast %200 : vector<1x32xf32> to vector<8x32xf32>
    %202 = arith.addf %199, %201 : vector<8x32xf32>
    %c0_116 = arith.constant 0 : index
    %c0_117 = arith.constant 0 : index
    %c0_118 = arith.constant 0 : index
    %203 = vector.load %arg11[%c0_116, %c0_117, %c0_118] : memref<1x8x32xf32, #tpu.memory_space<vmem>>, vector<1x8x32xf32>
    %204 = vector.shape_cast %203 : vector<1x8x32xf32> to vector<8x32xf32>
    %205 = vector.shape_cast %202 : vector<8x32xf32> to vector<1x8x32xf32>
    tpu.vector_store %arg11[%c0_116, %c0_117, %c0_118], %205 {strides = array<i32>} : memref<1x8x32xf32, #tpu.memory_space<vmem>>, vector<1x8x32xf32>,
    return
  }
  func.func @transform_0(%arg0: i32, %arg1: i32) -> (i32, i32, i32) {
    %c0_i32 = arith.constant 0 : i32
    %c0_i32_0 = arith.constant 0 : i32
    return %arg0, %arg1, %c0_i32 : i32, i32, i32
  }
  func.func @transform_1(%arg0: i32, %arg1: i32) -> (i32, i32) {
    %c0_i32 = arith.constant 0 : i32
    %c0_i32_0 = arith.constant 0 : i32
    %c0_i32_1 = arith.constant 0 : i32
    return %c0_i32, %c0_i32_0 : i32, i32
  }
  func.func @transform_2(%arg0: i32, %arg1: i32) -> (i32, i32) {
    %c0_i32 = arith.constant 0 : i32
    %c0_i32_0 = arith.constant 0 : i32
    %c0_i32_1 = arith.constant 0 : i32
    return %c0_i32, %c0_i32_0 : i32, i32
  }
  func.func @transform_3(%arg0: i32, %arg1: i32) -> (i32, i32) {
    %c0_i32 = arith.constant 0 : i32
    %c0_i32_0 = arith.constant 0 : i32
    %c0_i32_1 = arith.constant 0 : i32
    return %c0_i32, %c0_i32_0 : i32, i32
  }
  func.func @transform_4(%arg0: i32, %arg1: i32) -> (i32, i32) {
    %c0_i32 = arith.constant 0 : i32
    %c0_i32_0 = arith.constant 0 : i32
    %c0_i32_1 = arith.constant 0 : i32
    return %c0_i32, %c0_i32_0 : i32, i32
  }
  func.func @transform_5(%arg0: i32, %arg1: i32) -> (i32, i32) {
    %c0_i32 = arith.constant 0 : i32
    %c0_i32_0 = arith.constant 0 : i32
    %c0_i32_1 = arith.constant 0 : i32
    return %c0_i32, %c0_i32_0 : i32, i32
  }
  func.func @transform_6(%arg0: i32, %arg1: i32) -> (i32, i32) {
    %c0_i32 = arith.constant 0 : i32
    %c0_i32_0 = arith.constant 0 : i32
    %c0_i32_1 = arith.constant 0 : i32
    return %c0_i32, %c0_i32_0 : i32, i32
  }
  func.func @transform_7(%arg0: i32, %arg1: i32) -> (i32, i32) {
    %c0_i32 = arith.constant 0 : i32
    %c0_i32_0 = arith.constant 0 : i32
    %c0_i32_1 = arith.constant 0 : i32
    return %c0_i32, %c0_i32_0 : i32, i32
  }
  func.func @transform_8(%arg0: i32, %arg1: i32) -> (i32, i32) {
    %c0_i32 = arith.constant 0 : i32
    %c0_i32_0 = arith.constant 0 : i32
    %c0_i32_1 = arith.constant 0 : i32
    return %c0_i32, %c0_i32_0 : i32, i32
  }
  func.func @transform_9(%arg0: i32, %arg1: i32) -> (i32, i32, i32) {
    %c0_i32 = arith.constant 0 : i32
    %c0_i32_0 = arith.constant 0 : i32
    return %arg0, %arg1, %c0_i32 : i32, i32, i32
  }
}

</mosaic_0001>

<llo_original>
// kernel: tpu_custom_call.1
$region0: #{tpu_custom_call.1}
  #allocation0 [shape = 'u32[]', space=smem, size = 0x4, offset = 0x4, fixed_abs, tag = 'smem constant byte address 0x4 - core index']
  #allocation1 [shape = 'u32[144,128]{1,0:T(1,128)}', space=vmem, size = 0x12000, scoped, tag = 'internal scratch']
  #allocation2 [shape = 'f32[4,8,8]{2,1,0:T(8,128)}', space=vmem, size = 0x4000, scoped, tag = 'scratch operand']
  #allocation3 [shape = 'f32[4,1,8]{2,1,0:T(1,128)}', space=vmem, size = 0x800, scoped, tag = 'scratch operand']
  %s0 = inlined_call_operand.hbm [shape: f32[2,8,32], index: 0, kind: input, shape index: {}]
  %s1 = inlined_call_operand.hbm [shape: bf16[32,32], index: 1, kind: input, shape index: {}]
  %s2 = inlined_call_operand.vmem [shape: f32[1,32], index: 2, kind: input, shape index: {}]
  %s3 = inlined_call_operand.hbm [shape: bf16[32,32], index: 3, kind: input, shape index: {}]
  %s4 = inlined_call_operand.vmem [shape: f32[1,32], index: 4, kind: input, shape index: {}]
  %s5 = inlined_call_operand.vmem [shape: bf16[32,32], index: 5, kind: input, shape index: {}]
  %s6 = inlined_call_operand.vmem [shape: f32[1,32], index: 6, kind: input, shape index: {}]
  %s7 = inlined_call_operand.hbm [shape: bf16[32,32], index: 7, kind: input, shape index: {}]
  %s8 = inlined_call_operand.vmem [shape: f32[1,32], index: 8, kind: input, shape index: {}]
  %s9 = inlined_call_operand.hbm [shape: f32[2,8,32], index: 9, kind: output, shape index: {}]
  %s10 = sld [smem:[#allocation0]]
  $region89: #{tpu_custom_call.1} parent=0
    _
  %s12 = ssub.s32 1, %s10
  %s13 = scalar_select 0, %s12, %s10
  $region1: #{tpu_custom_call.1} parent=0
    #allocation4 [shape = 'u8[8192]{0}', space=vmem, size = 0x2000, scoped, tag = 'input window, operand 0']
    #allocation5 [shape = 's32[2]{0}', space=sflag, size = 0x8, scoped, tag = 'scoped memory for tpu_custom_call.1']
    #allocation6 [shape = 's32[2]{0}', space=sflag, size = 0x8, scoped, tag = 'scoped memory for tpu_custom_call.1']
    #allocation7 [shape = 'u8[8192]{0}', space=vmem, size = 0x2000, scoped, tag = 'input window, operand 1, single buffered']
    #allocation8 [shape = 's32[1]{0}', space=sflag, size = 0x4, scoped, tag = 'scoped memory for tpu_custom_call.1']
    #allocation9 [shape = 'u8[8192]{0}', space=vmem, size = 0x2000, scoped, tag = 'input window, operand 3, single buffered']
    #allocation10 [shape = 'u8[8192]{0}', space=vmem, size = 0x2000, scoped, tag = 'input window, operand 7, single buffered']
    #allocation11 [shape = 's32[1]{0}', space=sflag, size = 0x4, scoped, tag = 'scoped memory for tpu_custom_call.1']
    #allocation12 [shape = 'u8[8192]{0}', space=vmem, size = 0x2000, scoped, tag = 'output window, operand 0']
    %14 = vsyncpa [#allocation5], 0
    %s15 = scalar_lea.sflag [#allocation5], 1
    %16 = vsyncpa %s15, 0
    %17 = vsyncpa [#allocation8], 0
    %18 = vsyncpa [#allocation11], 0
    %19 = vsyncpa [#allocation6], 0
    %s20 = scalar_lea.sflag [#allocation6], 1
    %21 = vsyncpa %s20, 0
    loop: start=0, step=1, limit=4
    $region2: #{tpu_custom_call.1} parent=1 // loop_pre_header
      _
    $region3: #{tpu_custom_call.1} parent=1 // loop_header
      %s23 = sphi 0, %s27
      %p24 = scmp.ge.s32.totalorder %s23, 4
      %s30 = sphi 0, %s42
      %s31 = sphi 0, %s38
      %s32 = sphi 0, %s30
      %s33 = sphi 0, %s31
      %s34 = sphi 0, %s32
      %s35 = sphi 0, %s33
      %s47 = sphi 0, %s49
      %s50 = sphi 0, %s47
      %s51 = sphi 0, %s50
      %s67 = sphi 0, %s51
      %s71 = sphi 0, %s71
      %s73 = sphi 0, %s71
      %s74 = sphi 0, %s73
      %s88 = sphi 0, %s74
      %s92 = sphi 0, %s92
      %s94 = sphi 0, %s92
      %s95 = sphi 0, %s94
      %s109 = sphi 0, %s95
      %s113 = sphi 0, %s113
      %s115 = sphi 0, %s113
      %s116 = sphi 0, %s115
      %s130 = sphi 0, %s116
      %s134 = sphi 0, %s134
      %s136 = sphi 0, %s134
      %s137 = sphi 0, %s136
      %s151 = sphi 0, %s137
      %s155 = sphi 0, %s155
      %s157 = sphi 0, %s155
      %s158 = sphi 0, %s157
      %s172 = sphi 0, %s158
      %s176 = sphi 0, %s176
      %s178 = sphi 0, %s176
      %s179 = sphi 0, %s178
      %s193 = sphi 0, %s179
      %s197 = sphi 0, %s197
      %s199 = sphi 0, %s197
      %s200 = sphi 0, %s199
      %s214 = sphi 0, %s200
      %s218 = sphi 0, %s218
      %s220 = sphi 0, %s218
      %s221 = sphi 0, %s220
      %s235 = sphi 0, %s221
      %s243 = sphi 0, %s245
      %s246 = sphi 0, %s243
      %s247 = sphi 0, %s246
      %s263 = sphi 0, %s247
    $region4: #{tpu_custom_call.1} parent=1 // loop_header_branch
      %26 = sbr.rel (%p24) target = $region8
    $region5: #{tpu_custom_call.1} parent=1 // loop_body
      %s28 = ssub.s32 %s23, 1
      %s29 = ssub.s32 %s23, 2
      %s36 = sadd.s32 1, %s31
      %p37 = scmp.ge.s32.totalorder %s36, 1
      %s38 = scalar_select %p37, 0, %s36
      %s39 = sadd.s32 1, %s30
      %s40 = scalar_select %p37, %s39, %s30
      %p41 = scmp.ge.s32.totalorder %s40, 2
      %s42 = scalar_select %p41, 0, %s40
      %s43 = ssub.s32 %s30, %s42
      %s44 = ssub.s32 %s31, %s38
      %s45 = sor.u32 %s43, %s44
      %p46 = scmp.eq.s32.totalorder %s45, 0
      %s48 = sadd.s32 %s47, 1
      %s49 = scalar_select %p46, %s47, %s48
      %p52 = pneg %p46
      %p53 = scmp.eq.s32.totalorder %s23, 1
      %p54 = por %p52, %p53
      %p55 = scmp.ne.s32.totalorder %s47, %s50
      %p56 = scmp.eq.s32.totalorder %s23, 0
      %p57 = por %p55, %p56
      %p58 = scmp.ne.s32.totalorder %s47, %s50
      %p59 = scmp.eq.s32.totalorder %s28, 1
      %p60 = por %p58, %p59
      %p61 = scmp.ne.s32.totalorder %s50, %s51
      %p62 = scmp.eq.s32.totalorder %s28, 0
      %p63 = por %p61, %p62
      %p64 = scmp.ne.s32.totalorder %s50, %s51
      %p65 = scmp.eq.s32.totalorder %s29, 1
      %p66 = por %p64, %p65
      %p68 = scmp.ne.s32.totalorder %s51, %s67
      %p69 = scmp.eq.s32.totalorder %s29, 0
      %p70 = por %p68, %p69
      %s72 = sadd.s32 %s71, 1
      %p75 = scmp.eq.s32.totalorder %s23, 1
      %p76 = scmp.ne.s32.totalorder %s71, %s73
      %p77 = scmp.eq.s32.totalorder %s23, 0
      %p78 = por %p76, %p77
      %p79 = scmp.ne.s32.totalorder %s71, %s73
      %p80 = scmp.eq.s32.totalorder %s28, 1
      %p81 = por %p79, %p80
      %p82 = scmp.ne.s32.totalorder %s73, %s74
      %p83 = scmp.eq.s32.totalorder %s28, 0
      %p84 = por %p82, %p83
      %p85 = scmp.ne.s32.totalorder %s73, %s74
      %p86 = scmp.eq.s32.totalorder %s29, 1
      %p87 = por %p85, %p86
      %p89 = scmp.ne.s32.totalorder %s74, %s88
      %p90 = scmp.eq.s32.totalorder %s29, 0
      %p91 = por %p89, %p90
      %s93 = sadd.s32 %s92, 1
      %p96 = scmp.eq.s32.totalorder %s23, 1
      %p97 = scmp.ne.s32.totalorder %s92, %s94
      %p98 = scmp.eq.s32.totalorder %s23, 0
      %p99 = por %p97, %p98
      %p100 = scmp.ne.s32.totalorder %s92, %s94
      %p101 = scmp.eq.s32.totalorder %s28, 1
      %p102 = por %p100, %p101
      %p103 = scmp.ne.s32.totalorder %s94, %s95
      %p104 = scmp.eq.s32.totalorder %s28, 0
      %p105 = por %p103, %p104
      %p106 = scmp.ne.s32.totalorder %s94, %s95
      %p107 = scmp.eq.s32.totalorder %s29, 1
      %p108 = por %p106, %p107
      %p110 = scmp.ne.s32.totalorder %s95, %s109
      %p111 = scmp.eq.s32.totalorder %s29, 0
      %p112 = por %p110, %p111
      %s114 = sadd.s32 %s113, 1
      %p117 = scmp.eq.s32.totalorder %s23, 1
      %p118 = scmp.ne.s32.totalorder %s113, %s115
      %p119 = scmp.eq.s32.totalorder %s23, 0
      %p120 = por %p118, %p119
      %p121 = scmp.ne.s32.totalorder %s113, %s115
      %p122 = scmp.eq.s32.totalorder %s28, 1
      %p123 = por %p121, %p122
      %p124 = scmp.ne.s32.totalorder %s115, %s116
      %p125 = scmp.eq.s32.totalorder %s28, 0
      %p126 = por %p124, %p125
      %p127 = scmp.ne.s32.totalorder %s115, %s116
      %p128 = scmp.eq.s32.totalorder %s29, 1
      %p129 = por %p127, %p128
      %p131 = scmp.ne.s32.totalorder %s116, %s130
      %p132 = scmp.eq.s32.totalorder %s29, 0
      %p133 = por %p131, %p132
      %s135 = sadd.s32 %s134, 1
      %p138 = scmp.eq.s32.totalorder %s23, 1
      %p139 = scmp.ne.s32.totalorder %s134, %s136
      %p140 = scmp.eq.s32.totalorder %s23, 0
      %p141 = por %p139, %p140
      %p142 = scmp.ne.s32.totalorder %s134, %s136
      %p143 = scmp.eq.s32.totalorder %s28, 1
      %p144 = por %p142, %p143
      %p145 = scmp.ne.s32.totalorder %s136, %s137
      %p146 = scmp.eq.s32.totalorder %s28, 0
      %p147 = por %p145, %p146
      %p148 = scmp.ne.s32.totalorder %s136, %s137
      %p149 = scmp.eq.s32.totalorder %s29, 1
      %p150 = por %p148, %p149
      %p152 = scmp.ne.s32.totalorder %s137, %s151
      %p153 = scmp.eq.s32.totalorder %s29, 0
      %p154 = por %p152, %p153
      %s156 = sadd.s32 %s155, 1
      %p159 = scmp.eq.s32.totalorder %s23, 1
      %p160 = scmp.ne.s32.totalorder %s155, %s157
      %p161 = scmp.eq.s32.totalorder %s23, 0
      %p162 = por %p160, %p161
      %p163 = scmp.ne.s32.totalorder %s155, %s157
      %p164 = scmp.eq.s32.totalorder %s28, 1
      %p165 = por %p163, %p164
      %p166 = scmp.ne.s32.totalorder %s157, %s158
      %p167 = scmp.eq.s32.totalorder %s28, 0
      %p168 = por %p166, %p167
      %p169 = scmp.ne.s32.totalorder %s157, %s158
      %p170 = scmp.eq.s32.totalorder %s29, 1
      %p171 = por %p169, %p170
      %p173 = scmp.ne.s32.totalorder %s158, %s172
      %p174 = scmp.eq.s32.totalorder %s29, 0
      %p175 = por %p173, %p174
      %s177 = sadd.s32 %s176, 1
      %p180 = scmp.eq.s32.totalorder %s23, 1
      %p181 = scmp.ne.s32.totalorder %s176, %s178
      %p182 = scmp.eq.s32.totalorder %s23, 0
      %p183 = por %p181, %p182
      %p184 = scmp.ne.s32.totalorder %s176, %s178
      %p185 = scmp.eq.s32.totalorder %s28, 1
      %p186 = por %p184, %p185
      %p187 = scmp.ne.s32.totalorder %s178, %s179
      %p188 = scmp.eq.s32.totalorder %s28, 0
      %p189 = por %p187, %p188
      %p190 = scmp.ne.s32.totalorder %s178, %s179
      %p191 = scmp.eq.s32.totalorder %s29, 1
      %p192 = por %p190, %p191
      %p194 = scmp.ne.s32.totalorder %s179, %s193
      %p195 = scmp.eq.s32.totalorder %s29, 0
      %p196 = por %p194, %p195
      %s198 = sadd.s32 %s197, 1
      %p201 = scmp.eq.s32.totalorder %s23, 1
      %p202 = scmp.ne.s32.totalorder %s197, %s199
      %p203 = scmp.eq.s32.totalorder %s23, 0
      %p204 = por %p202, %p203
      %p205 = scmp.ne.s32.totalorder %s197, %s199
      %p206 = scmp.eq.s32.totalorder %s28, 1
      %p207 = por %p205, %p206
      %p208 = scmp.ne.s32.totalorder %s199, %s200
      %p209 = scmp.eq.s32.totalorder %s28, 0
      %p210 = por %p208, %p209
      %p211 = scmp.ne.s32.totalorder %s199, %s200
      %p212 = scmp.eq.s32.totalorder %s29, 1
      %p213 = por %p211, %p212
      %p215 = scmp.ne.s32.totalorder %s200, %s214
      %p216 = scmp.eq.s32.totalorder %s29, 0
      %p217 = por %p215, %p216
      %s219 = sadd.s32 %s218, 1
      %p222 = scmp.eq.s32.totalorder %s23, 1
      %p223 = scmp.ne.s32.totalorder %s218, %s220
      %p224 = scmp.eq.s32.totalorder %s23, 0
      %p225 = por %p223, %p224
      %p226 = scmp.ne.s32.totalorder %s218, %s220
      %p227 = scmp.eq.s32.totalorder %s28, 1
      %p228 = por %p226, %p227
      %p229 = scmp.ne.s32.totalorder %s220, %s221
      %p230 = scmp.eq.s32.totalorder %s28, 0
      %p231 = por %p229, %p230
      %p232 = scmp.ne.s32.totalorder %s220, %s221
      %p233 = scmp.eq.s32.totalorder %s29, 1
      %p234 = por %p232, %p233
      %p236 = scmp.ne.s32.totalorder %s221, %s235
      %p237 = scmp.eq.s32.totalorder %s29, 0
      %p238 = por %p236, %p237
      %s239 = ssub.s32 %s30, %s42
      %s240 = ssub.s32 %s31, %s38
      %s241 = sor.u32 %s239, %s240
      %p242 = scmp.eq.s32.totalorder %s241, 0
      %s244 = sadd.s32 %s243, 1
      %s245 = scalar_select %p242, %s243, %s244
      %p248 = pneg %p242
      %p249 = scmp.eq.s32.totalorder %s23, 1
      %p250 = por %p248, %p249
      %p251 = scmp.ne.s32.totalorder %s243, %s246
      %p252 = scmp.eq.s32.totalorder %s23, 0
      %p253 = por %p251, %p252
      %p254 = scmp.ne.s32.totalorder %s243, %s246
      %p255 = scmp.eq.s32.totalorder %s28, 1
      %p256 = por %p254, %p255
      %p257 = scmp.ne.s32.totalorder %s246, %s247
      %p258 = scmp.eq.s32.totalorder %s28, 0
      %p259 = por %p257, %p258
      %p260 = scmp.ne.s32.totalorder %s246, %s247
      %p261 = scmp.eq.s32.totalorder %s29, 1
      %p262 = por %p260, %p261
      %p264 = scmp.ne.s32.totalorder %s247, %s263
      %p265 = scmp.eq.s32.totalorder %s29, 0
      %p266 = por %p264, %p265
      %p267 = scmp.le.s32.totalorder 1, %s23
      %p268 = scmp.lt.s32.totalorder %s23, 3
      %p269 = pnand %p267, %p268
      %p270 = pneg %p269
      // Predicated region
      $region9: #{tpu_custom_call.1} parent=5 // pred_check
        _
      $region10: #{tpu_custom_call.1} parent=5 // pred_check_branch
        %272 = sbr.rel (%p269) target = $region12
      $region11: #{tpu_custom_call.1} parent=5 // pred_region
        %s273 = ssub.s32 %s23, 1
        // Predicated region
        $region13: #{tpu_custom_call.1} parent=11 // pred_check
          %p274 = pneg %p84
        $region14: #{tpu_custom_call.1} parent=11 // pred_check_branch
          %276 = sbr.rel (%p274) target = $region16
        $region15: #{tpu_custom_call.1} parent=11 // pred_region
          %s278 = ssub.s32 256, 256
          %279 = vsyncadd [#allocation8], %s278
          %s280 = sshll.u32 [#allocation7], 4
          %s281 = int_to_ptr.vmem [resolvable:$true] %s280
          %286 = dma.hbm_to_vmem [thread:$0]  %s1, 256, %s281, [#allocation8], 64, 64, 4
        $region16: #{tpu_custom_call.1} parent=11 // pred_fallthru
          _
        // Predicated region
        $region17: #{tpu_custom_call.1} parent=11 // pred_check
          %p287 = pneg %p105
        $region18: #{tpu_custom_call.1} parent=11 // pred_check_branch
          %289 = sbr.rel (%p287) target = $region20
        $region19: #{tpu_custom_call.1} parent=11 // pred_region
          _
        $region20: #{tpu_custom_call.1} parent=11 // pred_fallthru
          _
        // Predicated region
        $region21: #{tpu_custom_call.1} parent=11 // pred_check
          %p290 = pneg %p126
        $region22: #{tpu_custom_call.1} parent=11 // pred_check_branch
          %292 = sbr.rel (%p290) target = $region24
        $region23: #{tpu_custom_call.1} parent=11 // pred_region
          %s294 = ssub.s32 256, 256
          %295 = vsyncadd [#allocation8], %s294
          %s296 = sshll.u32 [#allocation9], 4
          %s297 = int_to_ptr.vmem [resolvable:$true] %s296
          %302 = dma.hbm_to_vmem [thread:$0]  %s3, 256, %s297, [#allocation8], 64, 64, 4
        $region24: #{tpu_custom_call.1} parent=11 // pred_fallthru
          _
        // Predicated region
        $region25: #{tpu_custom_call.1} parent=11 // pred_check
          %p303 = pneg %p147
        $region26: #{tpu_custom_call.1} parent=11 // pred_check_branch
          %305 = sbr.rel (%p303) target = $region28
        $region27: #{tpu_custom_call.1} parent=11 // pred_region
          _
        $region28: #{tpu_custom_call.1} parent=11 // pred_fallthru
          _
        // Predicated region
        $region29: #{tpu_custom_call.1} parent=11 // pred_check
          %p306 = pneg %p168
        $region30: #{tpu_custom_call.1} parent=11 // pred_check_branch
          %308 = sbr.rel (%p306) target = $region32
        $region31: #{tpu_custom_call.1} parent=11 // pred_region
          _
        $region32: #{tpu_custom_call.1} parent=11 // pred_fallthru
          _
        // Predicated region
        $region33: #{tpu_custom_call.1} parent=11 // pred_check
          %p309 = pneg %p189
        $region34: #{tpu_custom_call.1} parent=11 // pred_check_branch
          %311 = sbr.rel (%p309) target = $region36
        $region35: #{tpu_custom_call.1} parent=11 // pred_region
          _
        $region36: #{tpu_custom_call.1} parent=11 // pred_fallthru
          _
        // Predicated region
        $region37: #{tpu_custom_call.1} parent=11 // pred_check
          %p312 = pneg %p210
        $region38: #{tpu_custom_call.1} parent=11 // pred_check_branch
          %314 = sbr.rel (%p312) target = $region40
        $region39: #{tpu_custom_call.1} parent=11 // pred_region
          %s316 = ssub.s32 256, 256
          %317 = vsyncadd [#allocation11], %s316
          %s318 = sshll.u32 [#allocation10], 4
          %s319 = int_to_ptr.vmem [resolvable:$true] %s318
          %324 = dma.hbm_to_vmem [thread:$0]  %s7, 256, %s319, [#allocation11], 64, 64, 4
        $region40: #{tpu_custom_call.1} parent=11 // pred_fallthru
          _
        // Predicated region
        $region41: #{tpu_custom_call.1} parent=11 // pred_check
          %p325 = pneg %p231
        $region42: #{tpu_custom_call.1} parent=11 // pred_check_branch
          %327 = sbr.rel (%p325) target = $region44
        $region43: #{tpu_custom_call.1} parent=11 // pred_region
          _
        $region44: #{tpu_custom_call.1} parent=11 // pred_fallthru
          _
      $region12: #{tpu_custom_call.1} parent=5 // pred_fallthru
        _
      %p328 = scmp.lt.s32.totalorder %s23, 2
      // Predicated region
      $region45: #{tpu_custom_call.1} parent=5 // pred_check
        %p329 = pneg %p328
      $region46: #{tpu_custom_call.1} parent=5 // pred_check_branch
        %331 = sbr.rel (%p329) target = $region48
      $region47: #{tpu_custom_call.1} parent=5 // pred_region
        // Predicated region
        $region49: #{tpu_custom_call.1} parent=47 // pred_check
          %p332 = pneg %p57
        $region50: #{tpu_custom_call.1} parent=47 // pred_check_branch
          %334 = sbr.rel (%p332) target = $region52
        $region51: #{tpu_custom_call.1} parent=47 // pred_region
          %s335 = sand.u32 %s47, 1
          %s336 = scalar_lea.sflag [#allocation5], %s335
          %s337 = sand.u32 %s47, 1
          %s338 = smul.addr %s337, 8
          %s339 = scalar_lea.vmem [#allocation4], %s338
          %s341 = ssub.s32 128, 128
          %342 = vsyncadd %s336, %s341
          %s343 = sadd.s32 %s31, %s30
          %s344 = smul.addr %s343, 128
          %s345 = scalar_lea.hbm %s0, %s344
          %s347 = sshll.u32 %s339, 4
          %s348 = int_to_ptr.vmem [resolvable:$true] %s347
          %350 = dma.hbm_to_vmem [thread:$0]  %s345, 128, %s348, %s336
        $region52: #{tpu_custom_call.1} parent=47 // pred_fallthru
          _
      $region48: #{tpu_custom_call.1} parent=5 // pred_fallthru
        _
      %p351 = scmp.le.s32.totalorder 1, %s23
      %p352 = scmp.lt.s32.totalorder %s23, 3
      %p353 = pnand %p351, %p352
      %p354 = pneg %p353
      // Predicated region
      $region53: #{tpu_custom_call.1} parent=5 // pred_check
        _
      $region54: #{tpu_custom_call.1} parent=5 // pred_check_branch
        %356 = sbr.rel (%p353) target = $region56
      $region55: #{tpu_custom_call.1} parent=5 // pred_region
        %s357 = ssub.s32 %s23, 1
        %s358 = sand.u32 %s50, 1
        %s359 = scalar_lea.sflag [#allocation5], %s358
        %s360 = sand.u32 %s50, 1
        %s361 = smul.addr %s360, 8
        %s362 = scalar_lea.vmem [#allocation4], %s361
        // Predicated region
        $region57: #{tpu_custom_call.1} parent=55 // pred_check
          %p363 = pneg %p63
        $region58: #{tpu_custom_call.1} parent=55 // pred_check_branch
          %365 = sbr.rel (%p363) target = $region60
        $region59: #{tpu_custom_call.1} parent=55 // pred_region
          %366 = dma.done %s359, 128
        $region60: #{tpu_custom_call.1} parent=55 // pred_fallthru
          _
        // Predicated region
        $region61: #{tpu_custom_call.1} parent=55 // pred_check
          %p367 = pneg %p84
        $region62: #{tpu_custom_call.1} parent=55 // pred_check_branch
          %369 = sbr.rel (%p367) target = $region64
        $region63: #{tpu_custom_call.1} parent=55 // pred_region
          %370 = dma.done [#allocation8], 256
        $region64: #{tpu_custom_call.1} parent=55 // pred_fallthru
          _
        // Predicated region
        $region65: #{tpu_custom_call.1} parent=55 // pred_check
          %p371 = pneg %p126
        $region66: #{tpu_custom_call.1} parent=55 // pred_check_branch
          %373 = sbr.rel (%p371) target = $region68
        $region67: #{tpu_custom_call.1} parent=55 // pred_region
          %374 = dma.done [#allocation8], 256
        $region68: #{tpu_custom_call.1} parent=55 // pred_fallthru
          _
        // Predicated region
        $region69: #{tpu_custom_call.1} parent=55 // pred_check
          %p375 = pneg %p210
        $region70: #{tpu_custom_call.1} parent=55 // pred_check_branch
          %377 = sbr.rel (%p375) target = $region72
        $region71: #{tpu_custom_call.1} parent=55 // pred_region
          %378 = dma.done [#allocation11], 256
        $region72: #{tpu_custom_call.1} parent=55 // pred_fallthru
          _
        %s379 = sand.u32 %s50, 1
        %s380 = scalar_lea.sflag [#allocation5], %s379
        %s381 = sand.u32 %s50, 1
        %s382 = smul.addr %s381, 8
        %s383 = scalar_lea.vmem [#allocation4], %s382
        %p384 = pneg %p63
        %p385 = pneg %p60
        %p386 = pneg %p84
        %p387 = pneg %p81
        %p388 = pneg %p105
        %p389 = pneg %p102
        %p390 = pneg %p126
        %p391 = pneg %p123
        %p392 = pneg %p147
        %p393 = pneg %p144
        %p394 = pneg %p168
        %p395 = pneg %p165
        %p396 = pneg %p189
        %p397 = pneg %p186
        %p398 = pneg %p210
        %p399 = pneg %p207
        %p400 = pneg %p231
        %p401 = pneg %p228
        %p402 = pneg %p259
        %p403 = pneg %p256
        %s404 = sand.u32 %s246, 1
        %s405 = scalar_lea.sflag [#allocation6], %s404
        %s406 = sand.u32 %s246, 1
        %s407 = smul.addr %s406, 8
        %s408 = scalar_lea.vmem [#allocation12], %s407
        %p410 = scmp.eq.s32.totalorder %s33, 0
        // Predicated region
        $region73: #{tpu_custom_call.1} parent=55 // pred_check
          %p411 = pneg %p410
        $region74: #{tpu_custom_call.1} parent=55 // pred_check_branch
          %413 = sbr.rel (%p411) target = $region76
        $region75: #{tpu_custom_call.1} parent=55 // pred_region
          %vm414 = vcmask 64512
          %415 = vst.msk [vmem:[#allocation2] sm:$0xff] %vm414, 0.0
          %416 = vst.msk [vmem:[#allocation2 + $0x8] sm:$0xff] %vm414, 0.0
          %417 = vst.msk [vmem:[#allocation2 + $0x10] sm:$0xff] %vm414, 0.0
          %418 = vst.msk [vmem:[#allocation2 + $0x18] sm:$0xff] %vm414, 0.0
          %vm419 = vcmask 57344
          %420 = vst.msk [vmem:[#allocation3] sm:$0x1] %vm419, 0.0
          %421 = vst.msk [vmem:[#allocation3 + $0x1] sm:$0x1] %vm419, 0.0
          %422 = vst.msk [vmem:[#allocation3 + $0x2] sm:$0x1] %vm419, 0.0
          %423 = vst.msk [vmem:[#allocation3 + $0x3] sm:$0x1] %vm419, 0.0
        $region76: #{tpu_custom_call.1} parent=55 // pred_fallthru
          _
        %v424 = vld [vmem:[%s362] sm:$0xff]
        %v425 = vpack.c.bf16 %v424, %v424
        %v426 = vld [vmem:[#allocation7] sm:$0xf]
        %v427 = vld [vmem:[#allocation7 + $0x4] sm:$0xf]
        %v428 = vld [vmem:[#allocation7 + $0x8] sm:$0xf]
        %v429 = vld [vmem:[#allocation7 + $0xc] sm:$0xf]
        %v430 = vld [vmem:[%s2] sm:$0x1]
        %v432 = vlaneseq
        %v433 = vshrl.u32 %v432, 7
        %v434 = vsub.s32 0, %v433
        %v435 = vrot.slane %v430, %v434
        %v441 = vunpack.c.l.b16 %v426
        %v442 = vunpack.c.l.b16 %v427
        %v443 = vunpack.c.l.b16 %v428
        %v444 = vunpack.c.l.b16 %v429
        %v445 = vpack.c.b16 %v442, %v441
        %v446 = vpack.c.b16 %v444, %v443
        %vm449 = vcmask 261120
        %v451 = vsel %vm449, %v425, 0
        %453 = vmatprep.subr.bf16.mxu0 0
        %454 = vmatpush1.bf16.msra.mxu0 %v445
        %455 = vmatprep.subr.bf16.mxu0 0
        %456 = vmatpush1.bf16.msra.mxu0 %v446
        %457 = vmatprep.subr.bf16.mxu0 0
        %458 = vmatpush1.bf16.msra.mxu0 0
        %459 = vmatprep.subr.bf16.mxu0 0
        %460 = vmatpush1.bf16.msra.mxu0 0
        %461 = vmatprep.subr.bf16.mxu0 0
        %462 = vmatpush1.bf16.msra.mxu0 0
        %463 = vmatprep.subr.bf16.mxu0 0
        %464 = vmatpush1.bf16.msra.mxu0 0
        %465 = vmatprep.subr.bf16.mxu0 0
        %466 = vmatpush1.bf16.msra.mxu0 0
        %467 = vmatprep.subr.bf16.mxu0 0
        %468 = vmatpush1.bf16.msra.mxu0 0
        %469 = vmatprep.subr.bf16.mxu0 0
        %470 = vmatpush1.bf16.msra.mxu0 0
        %471 = vmatprep.subr.bf16.mxu0 0
        %472 = vmatpush1.bf16.msra.mxu0 0
        %473 = vmatprep.subr.bf16.mxu0 0
        %474 = vmatpush1.bf16.msra.mxu0 0
        %475 = vmatprep.subr.bf16.mxu0 0
        %476 = vmatpush1.bf16.msra.mxu0 0
        %477 = vmatprep.subr.bf16.mxu0 0
        %478 = vmatpush1.bf16.msra.mxu0 0
        %479 = vmatprep.subr.bf16.mxu0 0
        %480 = vmatpush1.bf16.msra.mxu0 0
        %481 = vmatprep.subr.bf16.mxu0 0
        %482 = vmatpush1.bf16.msra.mxu0 0
        %483 = vmatprep.subr.bf16.mxu0 0
        %484 = vmatpush1.bf16.msra.mxu0 0
        %485 = vmatprep.mubr.bf16.mxu0 0
        %486 = vmatmul.mubr.bf16.gmra.mrb[0].mxu0 %v451
        %v487 = vpop.f32.mrb[0].mxu0
        %v488 = vadd.f32 %v435, %v487
        %v489 = vpop.f32.mrb[0].mxu0
        %v490 = vpop.f32.mrb[0].mxu0
        %v491 = vpop.f32.mrb[0].mxu0
        %492 = vdwg.mxu0
        %v493 = vld [vmem:[#allocation9] sm:$0xf]
        %v494 = vld [vmem:[#allocation9 + $0x4] sm:$0xf]
        %v495 = vld [vmem:[#allocation9 + $0x8] sm:$0xf]
        %v496 = vld [vmem:[#allocation9 + $0xc] sm:$0xf]
        %v497 = vld [vmem:[%s4] sm:$0x1]
        %v499 = vlaneseq
        %v500 = vshrl.u32 %v499, 7
        %v501 = vsub.s32 0, %v500
        %v502 = vrot.slane %v497, %v501
        %v508 = vunpack.c.l.b16 %v493
        %v509 = vunpack.c.l.b16 %v494
        %v510 = vunpack.c.l.b16 %v495
        %v511 = vunpack.c.l.b16 %v496
        %v512 = vpack.c.b16 %v509, %v508
        %v513 = vpack.c.b16 %v511, %v510
        %516 = vmatprep.subr.bf16.mxu0 0
        %517 = vmatpush1.bf16.msra.mxu0 %v512
        %518 = vmatprep.subr.bf16.mxu0 0
        %519 = vmatpush1.bf16.msra.mxu0 %v513
        %520 = vmatprep.subr.bf16.mxu0 0
        %521 = vmatpush1.bf16.msra.mxu0 0
        %522 = vmatprep.subr.bf16.mxu0 0
        %523 = vmatpush1.bf16.msra.mxu0 0
        %524 = vmatprep.subr.bf16.mxu0 0
        %525 = vmatpush1.bf16.msra.mxu0 0
        %526 = vmatprep.subr.bf16.mxu0 0
        %527 = vmatpush1.bf16.msra.mxu0 0
        %528 = vmatprep.subr.bf16.mxu0 0
        %529 = vmatpush1.bf16.msra.mxu0 0
        %530 = vmatprep.subr.bf16.mxu0 0
        %531 = vmatpush1.bf16.msra.mxu0 0
        %532 = vmatprep.subr.bf16.mxu0 0
        %533 = vmatpush1.bf16.msra.mxu0 0
        %534 = vmatprep.subr.bf16.mxu0 0
        %535 = vmatpush1.bf16.msra.mxu0 0
        %536 = vmatprep.subr.bf16.mxu0 0
        %537 = vmatpush1.bf16.msra.mxu0 0
        %538 = vmatprep.subr.bf16.mxu0 0
        %539 = vmatpush1.bf16.msra.mxu0 0
        %540 = vmatprep.subr.bf16.mxu0 0
        %541 = vmatpush1.bf16.msra.mxu0 0
        %542 = vmatprep.subr.bf16.mxu0 0
        %543 = vmatpush1.bf16.msra.mxu0 0
        %544 = vmatprep.subr.bf16.mxu0 0
        %545 = vmatpush1.bf16.msra.mxu0 0
        %546 = vmatprep.subr.bf16.mxu0 0
        %547 = vmatpush1.bf16.msra.mxu0 0
        %548 = vmatprep.mubr.bf16.mxu0 0
        %549 = vmatmul.mubr.bf16.gmra.mrb[0].mxu0 %v451
        %v550 = vpop.f32.mrb[0].mxu0
        %v551 = vadd.f32 %v502, %v550
        %v552 = vpop.f32.mrb[0].mxu0
        %v553 = vpop.f32.mrb[0].mxu0
        %v554 = vpop.f32.mrb[0].mxu0
        %555 = vdwg.mxu0
        %v556 = vld [vmem:[%s5] sm:$0xf]
        %v557 = vld [vmem:[%s5 + $0x4] sm:$0xf]
        %v558 = vld [vmem:[%s5 + $0x8] sm:$0xf]
        %v559 = vld [vmem:[%s5 + $0xc] sm:$0xf]
        %v560 = vld [vmem:[%s6] sm:$0x1]
        %v562 = vlaneseq
        %v563 = vshrl.u32 %v562, 7
        %v564 = vsub.s32 0, %v563
        %v565 = vrot.slane %v560, %v564
        %v571 = vunpack.c.l.b16 %v556
        %v572 = vunpack.c.l.b16 %v557
        %v573 = vunpack.c.l.b16 %v558
        %v574 = vunpack.c.l.b16 %v559
        %v575 = vpack.c.b16 %v572, %v571
        %v576 = vpack.c.b16 %v574, %v573
        %579 = vmatprep.subr.bf16.mxu0 0
        %580 = vmatpush1.bf16.msra.mxu0 %v575
        %581 = vmatprep.subr.bf16.mxu0 0
        %582 = vmatpush1.bf16.msra.mxu0 %v576
        %583 = vmatprep.subr.bf16.mxu0 0
        %584 = vmatpush1.bf16.msra.mxu0 0
        %585 = vmatprep.subr.bf16.mxu0 0
        %586 = vmatpush1.bf16.msra.mxu0 0
        %587 = vmatprep.subr.bf16.mxu0 0
        %588 = vmatpush1.bf16.msra.mxu0 0
        %589 = vmatprep.subr.bf16.mxu0 0
        %590 = vmatpush1.bf16.msra.mxu0 0
        %591 = vmatprep.subr.bf16.mxu0 0
        %592 = vmatpush1.bf16.msra.mxu0 0
        %593 = vmatprep.subr.bf16.mxu0 0
        %594 = vmatpush1.bf16.msra.mxu0 0
        %595 = vmatprep.subr.bf16.mxu0 0
        %596 = vmatpush1.bf16.msra.mxu0 0
        %597 = vmatprep.subr.bf16.mxu0 0
        %598 = vmatpush1.bf16.msra.mxu0 0
        %599 = vmatprep.subr.bf16.mxu0 0
        %600 = vmatpush1.bf16.msra.mxu0 0
        %601 = vmatprep.subr.bf16.mxu0 0
        %602 = vmatpush1.bf16.msra.mxu0 0
        %603 = vmatprep.subr.bf16.mxu0 0
        %604 = vmatpush1.bf16.msra.mxu0 0
        %605 = vmatprep.subr.bf16.mxu0 0
        %606 = vmatpush1.bf16.msra.mxu0 0
        %607 = vmatprep.subr.bf16.mxu0 0
        %608 = vmatpush1.bf16.msra.mxu0 0
        %609 = vmatprep.subr.bf16.mxu0 0
        %610 = vmatpush1.bf16.msra.mxu0 0
        %611 = vmatprep.mubr.bf16.mxu0 0
        %612 = vmatmul.mubr.bf16.gmra.mrb[0].mxu0 %v451
        %v613 = vpop.f32.mrb[0].mxu0
        %v614 = vadd.f32 %v565, %v613
        %v615 = vpop.f32.mrb[0].mxu0
        %v616 = vpop.f32.mrb[0].mxu0
        %v617 = vpop.f32.mrb[0].mxu0
        %618 = vdwg.mxu0
        %v619 = vmul.f32 %v488, 0.35355338
        %vm620 = vcmp.gt.f32.partialorder %v619, 0.0
        %v621 = vadd.f32 %v619, 1.0
        %v622 = vmin.f32 %v619, 0.0
        %v623 = vmul.f32 %v622, 1.442695
        %v624 = vpow.pop %v623
        %v625 = vsel %vm620, %v621, %v624
        %vm626 = vcmp.gt.f32.partialorder %v551, 0.0
        %v627 = vadd.f32 %v551, 1.0
        %v628 = vmin.f32 %v551, 0.0
        %v629 = vmul.f32 %v628, 1.442695
        %v630 = vpow.pop %v629
        %v631 = vsel %vm626, %v627, %v630
        %v632 = vlaneseq
        %v633 = vshrl.u32 %v632, 7
        %v634 = vlaneseq
        %v635 = vand.u32 %v634, 127
        %vm636 = vcmp.ge.s32.totalorder %v633, %v635
        %v637 = vld [vmem:[#allocation2] sm:$0xff]
        %v638 = vld [vmem:[#allocation3] sm:$0x1]
        %vm639 = vcmask 64512
        %v641 = vsel %vm639, %v625, 0
        %v644 = vsel %vm639, %v631, 0
        %646 = vmatprep.subr.mxu0 0.0
        %647 = vmatpush1.xpose.msra.mxu0 %v644
        %648 = vmatprep.subr.mxu0 0.0
        %649 = vmatpush1.xpose.msra.mxu0 0.0
        %650 = vmatprep.subr.mxu0 0.0
        %651 = vmatpush1.xpose.msra.mxu0 0.0
        %652 = vmatprep.subr.mxu0 0.0
        %653 = vmatpush1.xpose.msra.mxu0 0.0
        %654 = vmatprep.subr.mxu0 0.0
        %655 = vmatpush1.xpose.msra.mxu0 0.0
        %656 = vmatprep.subr.mxu0 0.0
        %657 = vmatpush1.xpose.msra.mxu0 0.0
        %658 = vmatprep.subr.mxu0 0.0
        %659 = vmatpush1.xpose.msra.mxu0 0.0
        %660 = vmatprep.subr.mxu0 0.0
        %661 = vmatpush1.xpose.msra.mxu0 0.0
        %662 = vmatprep.subr.mxu0 0.0
        %663 = vmatpush1.xpose.msra.mxu0 0.0
        %664 = vmatprep.subr.mxu0 0.0
        %665 = vmatpush1.xpose.msra.mxu0 0.0
        %666 = vmatprep.subr.mxu0 0.0
        %667 = vmatpush1.xpose.msra.mxu0 0.0
        %668 = vmatprep.subr.mxu0 0.0
        %669 = vmatpush1.xpose.msra.mxu0 0.0
        %670 = vmatprep.subr.mxu0 0.0
        %671 = vmatpush1.xpose.msra.mxu0 0.0
        %672 = vmatprep.subr.mxu0 0.0
        %673 = vmatpush1.xpose.msra.mxu0 0.0
        %674 = vmatprep.subr.mxu0 0.0
        %675 = vmatpush1.xpose.msra.mxu0 0.0
        %676 = vmatprep.subr.mxu0 0.0
        %677 = vmatpush1.xpose.msra.mxu0 0.0
        %678 = vmatprep.subr.mxu0 0.0
        %679 = vmatpush1.xpose.msra.mxu0 0.0
        %680 = vmatprep.subr.mxu0 0.0
        %681 = vmatpush1.xpose.msra.mxu0 0.0
        %682 = vmatprep.subr.mxu0 0.0
        %683 = vmatpush1.xpose.msra.mxu0 0.0
        %684 = vmatprep.subr.mxu0 0.0
        %685 = vmatpush1.xpose.msra.mxu0 0.0
        %686 = vmatprep.subr.mxu0 0.0
        %687 = vmatpush1.xpose.msra.mxu0 0.0
        %688 = vmatprep.subr.mxu0 0.0
        %689 = vmatpush1.xpose.msra.mxu0 0.0
        %690 = vmatprep.subr.mxu0 0.0
        %691 = vmatpush1.xpose.msra.mxu0 0.0
        %692 = vmatprep.subr.mxu0 0.0
        %693 = vmatpush1.xpose.msra.mxu0 0.0
        %694 = vmatprep.subr.mxu0 0.0
        %695 = vmatpush1.xpose.msra.mxu0 0.0
        %696 = vmatprep.subr.mxu0 0.0
        %697 = vmatpush1.xpose.msra.mxu0 0.0
        %698 = vmatprep.subr.mxu0 0.0
        %699 = vmatpush1.xpose.msra.mxu0 0.0
        %700 = vmatprep.subr.mxu0 0.0
        %701 = vmatpush1.xpose.msra.mxu0 0.0
        %702 = vmatprep.subr.mxu0 0.0
        %703 = vmatpush1.xpose.msra.mxu0 0.0
        %704 = vmatprep.subr.mxu0 0.0
        %705 = vmatpush1.xpose.msra.mxu0 0.0
        %706 = vmatprep.subr.mxu0 0.0
        %707 = vmatpush1.xpose.msra.mxu0 0.0
        %708 = vmatprep.subr.mxu0 0.0
        %709 = vmatpush1.xpose.msra.mxu0 0.0
        %710 = vmatprep.mubr.f32.mxu0 0.0
        %711 = vmatmul.mubr.f32.gmra.mrb[0].mxu0 %v641
        %v712 = vpop.f32.mrb[0].mxu0
        %v713 = vadd.f32 0.0, %v712
        %v714 = vpop.f32.mrb[0].mxu0
        %715 = vdwg.mxu0
        %v716 = vsel %vm636, %v713, 0.0
        %717 = vmatprep.subr.mxu0 0.0
        %718 = vmatpush1.msra.mxu0 %v637
        %719 = vmatprep.subr.mxu0 0.0
        %720 = vmatpush1.msra.mxu0 0.0
        %721 = vmatprep.subr.mxu0 0.0
        %722 = vmatpush1.msra.mxu0 0.0
        %723 = vmatprep.subr.mxu0 0.0
        %724 = vmatpush1.msra.mxu0 0.0
        %725 = vmatprep.subr.mxu0 0.0
        %726 = vmatpush1.msra.mxu0 0.0
        %727 = vmatprep.subr.mxu0 0.0
        %728 = vmatpush1.msra.mxu0 0.0
        %729 = vmatprep.subr.mxu0 0.0
        %730 = vmatpush1.msra.mxu0 0.0
        %731 = vmatprep.subr.mxu0 0.0
        %732 = vmatpush1.msra.mxu0 0.0
        %733 = vmatprep.subr.mxu0 0.0
        %734 = vmatpush1.msra.mxu0 0.0
        %735 = vmatprep.subr.mxu0 0.0
        %736 = vmatpush1.msra.mxu0 0.0
        %737 = vmatprep.subr.mxu0 0.0
        %738 = vmatpush1.msra.mxu0 0.0
        %739 = vmatprep.subr.mxu0 0.0
        %740 = vmatpush1.msra.mxu0 0.0
        %741 = vmatprep.subr.mxu0 0.0
        %742 = vmatpush1.msra.mxu0 0.0
        %743 = vmatprep.subr.mxu0 0.0
        %744 = vmatpush1.msra.mxu0 0.0
        %745 = vmatprep.subr.mxu0 0.0
        %746 = vmatpush1.msra.mxu0 0.0
        %747 = vmatprep.subr.mxu0 0.0
        %748 = vmatpush1.msra.mxu0 0.0
        %749 = vmatprep.subr.mxu0 0.0
        %750 = vmatpush1.msra.mxu0 0.0
        %751 = vmatprep.subr.mxu0 0.0
        %752 = vmatpush1.msra.mxu0 0.0
        %753 = vmatprep.subr.mxu0 0.0
        %754 = vmatpush1.msra.mxu0 0.0
        %755 = vmatprep.subr.mxu0 0.0
        %756 = vmatpush1.msra.mxu0 0.0
        %757 = vmatprep.subr.mxu0 0.0
        %758 = vmatpush1.msra.mxu0 0.0
        %759 = vmatprep.subr.mxu0 0.0
        %760 = vmatpush1.msra.mxu0 0.0
        %761 = vmatprep.subr.mxu0 0.0
        %762 = vmatpush1.msra.mxu0 0.0
        %763 = vmatprep.subr.mxu0 0.0
        %764 = vmatpush1.msra.mxu0 0.0
        %765 = vmatprep.subr.mxu0 0.0
        %766 = vmatpush1.msra.mxu0 0.0
        %767 = vmatprep.subr.mxu0 0.0
        %768 = vmatpush1.msra.mxu0 0.0
        %769 = vmatprep.subr.mxu0 0.0
        %770 = vmatpush1.msra.mxu0 0.0
        %771 = vmatprep.subr.mxu0 0.0
        %772 = vmatpush1.msra.mxu0 0.0
        %773 = vmatprep.subr.mxu0 0.0
        %774 = vmatpush1.msra.mxu0 0.0
        %775 = vmatprep.subr.mxu0 0.0
        %776 = vmatpush1.msra.mxu0 0.0
        %777 = vmatprep.subr.mxu0 0.0
        %778 = vmatpush1.msra.mxu0 0.0
        %779 = vmatprep.subr.mxu0 0.0
        %780 = vmatpush1.msra.mxu0 0.0
        %781 = vmatprep.mubr.f32.mxu0 0.0
        %782 = vmatmul.mubr.f32.gmra.mrb[0].mxu0 %v641
        %v783 = vpop.f32.mrb[0].mxu0
        %v784 = vadd.f32 0.0, %v783
        %v785 = vpop.f32.mrb[0].mxu0
        %786 = vdwg.mxu0
        %v788 = vsel %vm639, %v716, 0
        %790 = vmatprep.subr.mxu0 0.0
        %791 = vmatpush1.msra.mxu0 %v614
        %792 = vmatprep.subr.mxu0 0.0
        %793 = vmatpush1.msra.mxu0 0.0
        %794 = vmatprep.subr.mxu0 0.0
        %795 = vmatpush1.msra.mxu0 0.0
        %796 = vmatprep.subr.mxu0 0.0
        %797 = vmatpush1.msra.mxu0 0.0
        %798 = vmatprep.subr.mxu0 0.0
        %799 = vmatpush1.msra.mxu0 0.0
        %800 = vmatprep.subr.mxu0 0.0
        %801 = vmatpush1.msra.mxu0 0.0
        %802 = vmatprep.subr.mxu0 0.0
        %803 = vmatpush1.msra.mxu0 0.0
        %804 = vmatprep.subr.mxu0 0.0
        %805 = vmatpush1.msra.mxu0 0.0
        %806 = vmatprep.subr.mxu0 0.0
        %807 = vmatpush1.msra.mxu0 0.0
        %808 = vmatprep.subr.mxu0 0.0
        %809 = vmatpush1.msra.mxu0 0.0
        %810 = vmatprep.subr.mxu0 0.0
        %811 = vmatpush1.msra.mxu0 0.0
        %812 = vmatprep.subr.mxu0 0.0
        %813 = vmatpush1.msra.mxu0 0.0
        %814 = vmatprep.subr.mxu0 0.0
        %815 = vmatpush1.msra.mxu0 0.0
        %816 = vmatprep.subr.mxu0 0.0
        %817 = vmatpush1.msra.mxu0 0.0
        %818 = vmatprep.subr.mxu0 0.0
        %819 = vmatpush1.msra.mxu0 0.0
        %820 = vmatprep.subr.mxu0 0.0
        %821 = vmatpush1.msra.mxu0 0.0
        %822 = vmatprep.subr.mxu0 0.0
        %823 = vmatpush1.msra.mxu0 0.0
        %824 = vmatprep.subr.mxu0 0.0
        %825 = vmatpush1.msra.mxu0 0.0
        %826 = vmatprep.subr.mxu0 0.0
        %827 = vmatpush1.msra.mxu0 0.0
        %828 = vmatprep.subr.mxu0 0.0
        %829 = vmatpush1.msra.mxu0 0.0
        %830 = vmatprep.subr.mxu0 0.0
        %831 = vmatpush1.msra.mxu0 0.0
        %832 = vmatprep.subr.mxu0 0.0
        %833 = vmatpush1.msra.mxu0 0.0
        %834 = vmatprep.subr.mxu0 0.0
        %835 = vmatpush1.msra.mxu0 0.0
        %836 = vmatprep.subr.mxu0 0.0
        %837 = vmatpush1.msra.mxu0 0.0
        %838 = vmatprep.subr.mxu0 0.0
        %839 = vmatpush1.msra.mxu0 0.0
        %840 = vmatprep.subr.mxu0 0.0
        %841 = vmatpush1.msra.mxu0 0.0
        %842 = vmatprep.subr.mxu0 0.0
        %843 = vmatpush1.msra.mxu0 0.0
        %844 = vmatprep.subr.mxu0 0.0
        %845 = vmatpush1.msra.mxu0 0.0
        %846 = vmatprep.subr.mxu0 0.0
        %847 = vmatpush1.msra.mxu0 0.0
        %848 = vmatprep.subr.mxu0 0.0
        %849 = vmatpush1.msra.mxu0 0.0
        %850 = vmatprep.subr.mxu0 0.0
        %851 = vmatpush1.msra.mxu0 0.0
        %852 = vmatprep.subr.mxu0 0.0
        %853 = vmatpush1.msra.mxu0 0.0
        %854 = vmatprep.mubr.f32.mxu0 0.0
        %855 = vmatmul.mubr.f32.gmra.mrb[0].mxu0 %v788
        %v856 = vpop.f32.mrb[0].mxu0
        %v857 = vadd.f32 %v784, %v856
        %v858 = vpop.f32.mrb[0].mxu0
        %859 = vdwg.mxu0
        %v860 = vsel %vm639, %v716, 0.0
        %861 = vadd.xlane.f32.xlu0 %v860
        %v862 = vpop.xlane.xlu0 %861
        %v864 = vlaneseq
        %v865 = vshrl.u32 %v864, 7
        %v866 = vsub.s32 0, %v865
        %v867 = vrot.slane %v638, %v866
        %v869 = vmul.f32 %v625, %v867
        %v870 = vsel %vm639, %v869, 0.0
        %871 = vadd.xlane.f32.xlu0 %v870
        %v872 = vpop.xlane.xlu0 %871
        %v873 = vadd.f32 %v862, %v872
        %v874 = vadd.f32 %v873, 1e-06
        %v875 = vrcp.pop %v874
        %v876 = vmul.f32 %v857, %v875
        %877 = vxpose.xlu0.b32.start [1/16] %v631, 128
        %878 = vxpose.xlu0.b32.cont [2/16] 0.0, 128
        %879 = vxpose.xlu0.b32.cont [3/16] 0.0, 128
        %880 = vxpose.xlu0.b32.cont [4/16] 0.0, 128
        %881 = vxpose.xlu0.b32.cont [5/16] 0.0, 128
        %882 = vxpose.xlu0.b32.cont [6/16] 0.0, 128
        %883 = vxpose.xlu0.b32.cont [7/16] 0.0, 128
        %884 = vxpose.xlu0.b32.cont [8/16] 0.0, 128
        %885 = vxpose.xlu0.b32.cont [9/16] 0.0, 128
        %886 = vxpose.xlu0.b32.cont [10/16] 0.0, 128
        %887 = vxpose.xlu0.b32.cont [11/16] 0.0, 128
        %888 = vxpose.xlu0.b32.cont [12/16] 0.0, 128
        %889 = vxpose.xlu0.b32.cont [13/16] 0.0, 128
        %890 = vxpose.xlu0.b32.cont [14/16] 0.0, 128
        %891 = vxpose.xlu0.b32.cont [15/16] 0.0, 128
        %892 = vxpose.xlu0.b32.end [16/16] 0.0, 128
        %v893 = vpop.trf.xlu0
        %v894 = vpop.trf.xlu0
        %v895 = vpop.trf.xlu0
        %v896 = vpop.trf.xlu0
        %v897 = vpop.trf.xlu0
        %v898 = vpop.trf.xlu0
        %v899 = vpop.trf.xlu0
        %v900 = vpop.trf.xlu0
        %v901 = vpop.trf.xlu0
        %v902 = vpop.trf.xlu0
        %v903 = vpop.trf.xlu0
        %v904 = vpop.trf.xlu0
        %v905 = vpop.trf.xlu0
        %v906 = vpop.trf.xlu0
        %v907 = vpop.trf.xlu0
        %v908 = vpop.trf.xlu0
        %v910 = vsel %vm639, %v893, 0
        %912 = vmatprep.subr.mxu0 0.0
        %913 = vmatpush1.msra.mxu0 %v614
        %914 = vmatprep.subr.mxu0 0.0
        %915 = vmatpush1.msra.mxu0 0.0
        %916 = vmatprep.subr.mxu0 0.0
        %917 = vmatpush1.msra.mxu0 0.0
        %918 = vmatprep.subr.mxu0 0.0
        %919 = vmatpush1.msra.mxu0 0.0
        %920 = vmatprep.subr.mxu0 0.0
        %921 = vmatpush1.msra.mxu0 0.0
        %922 = vmatprep.subr.mxu0 0.0
        %923 = vmatpush1.msra.mxu0 0.0
        %924 = vmatprep.subr.mxu0 0.0
        %925 = vmatpush1.msra.mxu0 0.0
        %926 = vmatprep.subr.mxu0 0.0
        %927 = vmatpush1.msra.mxu0 0.0
        %928 = vmatprep.subr.mxu0 0.0
        %929 = vmatpush1.msra.mxu0 0.0
        %930 = vmatprep.subr.mxu0 0.0
        %931 = vmatpush1.msra.mxu0 0.0
        %932 = vmatprep.subr.mxu0 0.0
        %933 = vmatpush1.msra.mxu0 0.0
        %934 = vmatprep.subr.mxu0 0.0
        %935 = vmatpush1.msra.mxu0 0.0
        %936 = vmatprep.subr.mxu0 0.0
        %937 = vmatpush1.msra.mxu0 0.0
        %938 = vmatprep.subr.mxu0 0.0
        %939 = vmatpush1.msra.mxu0 0.0
        %940 = vmatprep.subr.mxu0 0.0
        %941 = vmatpush1.msra.mxu0 0.0
        %942 = vmatprep.subr.mxu0 0.0
        %943 = vmatpush1.msra.mxu0 0.0
        %944 = vmatprep.subr.mxu0 0.0
        %945 = vmatpush1.msra.mxu0 0.0
        %946 = vmatprep.subr.mxu0 0.0
        %947 = vmatpush1.msra.mxu0 0.0
        %948 = vmatprep.subr.mxu0 0.0
        %949 = vmatpush1.msra.mxu0 0.0
        %950 = vmatprep.subr.mxu0 0.0
        %951 = vmatpush1.msra.mxu0 0.0
        %952 = vmatprep.subr.mxu0 0.0
        %953 = vmatpush1.msra.mxu0 0.0
        %954 = vmatprep.subr.mxu0 0.0
        %955 = vmatpush1.msra.mxu0 0.0
        %956 = vmatprep.subr.mxu0 0.0
        %957 = vmatpush1.msra.mxu0 0.0
        %958 = vmatprep.subr.mxu0 0.0
        %959 = vmatpush1.msra.mxu0 0.0
        %960 = vmatprep.subr.mxu0 0.0
        %961 = vmatpush1.msra.mxu0 0.0
        %962 = vmatprep.subr.mxu0 0.0
        %963 = vmatpush1.msra.mxu0 0.0
        %964 = vmatprep.subr.mxu0 0.0
        %965 = vmatpush1.msra.mxu0 0.0
        %966 = vmatprep.subr.mxu0 0.0
        %967 = vmatpush1.msra.mxu0 0.0
        %968 = vmatprep.subr.mxu0 0.0
        %969 = vmatpush1.msra.mxu0 0.0
        %970 = vmatprep.subr.mxu0 0.0
        %971 = vmatpush1.msra.mxu0 0.0
        %972 = vmatprep.subr.mxu0 0.0
        %973 = vmatpush1.msra.mxu0 0.0
        %974 = vmatprep.subr.mxu0 0.0
        %975 = vmatpush1.msra.mxu0 0.0
        %976 = vmatprep.mubr.f32.mxu0 0.0
        %977 = vmatmul.mubr.f32.gmra.mrb[0].mxu0 %v910
        %v978 = vpop.f32.mrb[0].mxu0
        %v979 = vadd.f32 0.0, %v978
        %v980 = vpop.f32.mrb[0].mxu0
        %981 = vdwg.mxu0
        %v982 = vadd.f32 %v637, %v979
        %983 = vst.msk [vmem:[#allocation2] sm:$0xff] %vm639, %v982
        %v984 = vsel %vm639, %v631, 0.0
        %v985 = vrot.slane %v984, 4
        %v986 = vadd.f32 %v984, %v985
        %v987 = vrot.slane %v986, 2
        %v988 = vadd.f32 %v986, %v987
        %v989 = vrot.slane %v988, 1
        %v990 = vadd.f32 %v988, %v989
        %v991 = vadd.f32 %v638, %v990
        %vm992 = vcmask 57344
        %993 = vst.msk [vmem:[#allocation3] sm:$0x1] %vm992, %v991
        %s994 = scalar_lea.vmem [#allocation2], 8
        %v995 = vld [vmem:[%s994] sm:$0xff]
        %s996 = scalar_lea.vmem [#allocation3], 1
        %v997 = vld [vmem:[%s996] sm:$0x1]
        %998 = vrot.lane.b32.xlu0 %v625, 120
        %v999 = vpop.permute.xlu0 %998
        %1000 = vrot.lane.b32.xlu0 %v631, 120
        %v1001 = vpop.permute.xlu0 %1000
        %v1002 = vsel %vm639, %v999, 0
        %v1004 = vsel %vm639, %v1001, 0
        %1006 = vmatprep.subr.mxu0 0.0
        %1007 = vmatpush1.xpose.msra.mxu0 %v1004
        %1008 = vmatprep.subr.mxu0 0.0
        %1009 = vmatpush1.xpose.msra.mxu0 0.0
        %1010 = vmatprep.subr.mxu0 0.0
        %1011 = vmatpush1.xpose.msra.mxu0 0.0
        %1012 = vmatprep.subr.mxu0 0.0
        %1013 = vmatpush1.xpose.msra.mxu0 0.0
        %1014 = vmatprep.subr.mxu0 0.0
        %1015 = vmatpush1.xpose.msra.mxu0 0.0
        %1016 = vmatprep.subr.mxu0 0.0
        %1017 = vmatpush1.xpose.msra.mxu0 0.0
        %1018 = vmatprep.subr.mxu0 0.0
        %1019 = vmatpush1.xpose.msra.mxu0 0.0
        %1020 = vmatprep.subr.mxu0 0.0
        %1021 = vmatpush1.xpose.msra.mxu0 0.0
        %1022 = vmatprep.subr.mxu0 0.0
        %1023 = vmatpush1.xpose.msra.mxu0 0.0
        %1024 = vmatprep.subr.mxu0 0.0
        %1025 = vmatpush1.xpose.msra.mxu0 0.0
        %1026 = vmatprep.subr.mxu0 0.0
        %1027 = vmatpush1.xpose.msra.mxu0 0.0
        %1028 = vmatprep.subr.mxu0 0.0
        %1029 = vmatpush1.xpose.msra.mxu0 0.0
        %1030 = vmatprep.subr.mxu0 0.0
        %1031 = vmatpush1.xpose.msra.mxu0 0.0
        %1032 = vmatprep.subr.mxu0 0.0
        %1033 = vmatpush1.xpose.msra.mxu0 0.0
        %1034 = vmatprep.subr.mxu0 0.0
        %1035 = vmatpush1.xpose.msra.mxu0 0.0
        %1036 = vmatprep.subr.mxu0 0.0
        %1037 = vmatpush1.xpose.msra.mxu0 0.0
        %1038 = vmatprep.subr.mxu0 0.0
        %1039 = vmatpush1.xpose.msra.mxu0 0.0
        %1040 = vmatprep.subr.mxu0 0.0
        %1041 = vmatpush1.xpose.msra.mxu0 0.0
        %1042 = vmatprep.subr.mxu0 0.0
        %1043 = vmatpush1.xpose.msra.mxu0 0.0
        %1044 = vmatprep.subr.mxu0 0.0
        %1045 = vmatpush1.xpose.msra.mxu0 0.0
        %1046 = vmatprep.subr.mxu0 0.0
        %1047 = vmatpush1.xpose.msra.mxu0 0.0
        %1048 = vmatprep.subr.mxu0 0.0
        %1049 = vmatpush1.xpose.msra.mxu0 0.0
        %1050 = vmatprep.subr.mxu0 0.0
        %1051 = vmatpush1.xpose.msra.mxu0 0.0
        %1052 = vmatprep.subr.mxu0 0.0
        %1053 = vmatpush1.xpose.msra.mxu0 0.0
        %1054 = vmatprep.subr.mxu0 0.0
        %1055 = vmatpush1.xpose.msra.mxu0 0.0
        %1056 = vmatprep.subr.mxu0 0.0
        %1057 = vmatpush1.xpose.msra.mxu0 0.0
        %1058 = vmatprep.subr.mxu0 0.0
        %1059 = vmatpush1.xpose.msra.mxu0 0.0
        %1060 = vmatprep.subr.mxu0 0.0
        %1061 = vmatpush1.xpose.msra.mxu0 0.0
        %1062 = vmatprep.subr.mxu0 0.0
        %1063 = vmatpush1.xpose.msra.mxu0 0.0
        %1064 = vmatprep.subr.mxu0 0.0
        %1065 = vmatpush1.xpose.msra.mxu0 0.0
        %1066 = vmatprep.subr.mxu0 0.0
        %1067 = vmatpush1.xpose.msra.mxu0 0.0
        %1068 = vmatprep.subr.mxu0 0.0
        %1069 = vmatpush1.xpose.msra.mxu0 0.0
        %1070 = vmatprep.mubr.f32.mxu0 0.0
        %1071 = vmatmul.mubr.f32.gmra.mrb[0].mxu0 %v1002
        %v1072 = vpop.f32.mrb[0].mxu0
        %v1073 = vadd.f32 0.0, %v1072
        %v1074 = vpop.f32.mrb[0].mxu0
        %1075 = vdwg.mxu0
        %v1076 = vsel %vm636, %v1073, 0.0
        %1077 = vmatprep.subr.mxu0 0.0
        %1078 = vmatpush1.msra.mxu0 %v995
        %1079 = vmatprep.subr.mxu0 0.0
        %1080 = vmatpush1.msra.mxu0 0.0
        %1081 = vmatprep.subr.mxu0 0.0
        %1082 = vmatpush1.msra.mxu0 0.0
        %1083 = vmatprep.subr.mxu0 0.0
        %1084 = vmatpush1.msra.mxu0 0.0
        %1085 = vmatprep.subr.mxu0 0.0
        %1086 = vmatpush1.msra.mxu0 0.0
        %1087 = vmatprep.subr.mxu0 0.0
        %1088 = vmatpush1.msra.mxu0 0.0
        %1089 = vmatprep.subr.mxu0 0.0
        %1090 = vmatpush1.msra.mxu0 0.0
        %1091 = vmatprep.subr.mxu0 0.0
        %1092 = vmatpush1.msra.mxu0 0.0
        %1093 = vmatprep.subr.mxu0 0.0
        %1094 = vmatpush1.msra.mxu0 0.0
        %1095 = vmatprep.subr.mxu0 0.0
        %1096 = vmatpush1.msra.mxu0 0.0
        %1097 = vmatprep.subr.mxu0 0.0
        %1098 = vmatpush1.msra.mxu0 0.0
        %1099 = vmatprep.subr.mxu0 0.0
        %1100 = vmatpush1.msra.mxu0 0.0
        %1101 = vmatprep.subr.mxu0 0.0
        %1102 = vmatpush1.msra.mxu0 0.0
        %1103 = vmatprep.subr.mxu0 0.0
        %1104 = vmatpush1.msra.mxu0 0.0
        %1105 = vmatprep.subr.mxu0 0.0
        %1106 = vmatpush1.msra.mxu0 0.0
        %1107 = vmatprep.subr.mxu0 0.0
        %1108 = vmatpush1.msra.mxu0 0.0
        %1109 = vmatprep.subr.mxu0 0.0
        %1110 = vmatpush1.msra.mxu0 0.0
        %1111 = vmatprep.subr.mxu0 0.0
        %1112 = vmatpush1.msra.mxu0 0.0
        %1113 = vmatprep.subr.mxu0 0.0
        %1114 = vmatpush1.msra.mxu0 0.0
        %1115 = vmatprep.subr.mxu0 0.0
        %1116 = vmatpush1.msra.mxu0 0.0
        %1117 = vmatprep.subr.mxu0 0.0
        %1118 = vmatpush1.msra.mxu0 0.0
        %1119 = vmatprep.subr.mxu0 0.0
        %1120 = vmatpush1.msra.mxu0 0.0
        %1121 = vmatprep.subr.mxu0 0.0
        %1122 = vmatpush1.msra.mxu0 0.0
        %1123 = vmatprep.subr.mxu0 0.0
        %1124 = vmatpush1.msra.mxu0 0.0
        %1125 = vmatprep.subr.mxu0 0.0
        %1126 = vmatpush1.msra.mxu0 0.0
        %1127 = vmatprep.subr.mxu0 0.0
        %1128 = vmatpush1.msra.mxu0 0.0
        %1129 = vmatprep.subr.mxu0 0.0
        %1130 = vmatpush1.msra.mxu0 0.0
        %1131 = vmatprep.subr.mxu0 0.0
        %1132 = vmatpush1.msra.mxu0 0.0
        %1133 = vmatprep.subr.mxu0 0.0
        %1134 = vmatpush1.msra.mxu0 0.0
        %1135 = vmatprep.subr.mxu0 0.0
        %1136 = vmatpush1.msra.mxu0 0.0
        %1137 = vmatprep.subr.mxu0 0.0
        %1138 = vmatpush1.msra.mxu0 0.0
        %1139 = vmatprep.subr.mxu0 0.0
        %1140 = vmatpush1.msra.mxu0 0.0
        %1141 = vmatprep.mubr.f32.mxu0 0.0
        %1142 = vmatmul.mubr.f32.gmra.mrb[0].mxu0 %v1002
        %v1143 = vpop.f32.mrb[0].mxu0
        %v1144 = vadd.f32 0.0, %v1143
        %v1145 = vpop.f32.mrb[0].mxu0
        %1146 = vdwg.mxu0
        %1148 = vrot.lane.b32.xlu0 %v614, 120
        %v1149 = vpop.permute.xlu0 %1148
        %v1152 = vsel %vm639, %v1076, 0
        %1154 = vmatprep.subr.mxu0 0.0
        %1155 = vmatpush1.msra.mxu0 %v1149
        %1156 = vmatprep.subr.mxu0 0.0
        %1157 = vmatpush1.msra.mxu0 0.0
        %1158 = vmatprep.subr.mxu0 0.0
        %1159 = vmatpush1.msra.mxu0 0.0
        %1160 = vmatprep.subr.mxu0 0.0
        %1161 = vmatpush1.msra.mxu0 0.0
        %1162 = vmatprep.subr.mxu0 0.0
        %1163 = vmatpush1.msra.mxu0 0.0
        %1164 = vmatprep.subr.mxu0 0.0
        %1165 = vmatpush1.msra.mxu0 0.0
        %1166 = vmatprep.subr.mxu0 0.0
        %1167 = vmatpush1.msra.mxu0 0.0
        %1168 = vmatprep.subr.mxu0 0.0
        %1169 = vmatpush1.msra.mxu0 0.0
        %1170 = vmatprep.subr.mxu0 0.0
        %1171 = vmatpush1.msra.mxu0 0.0
        %1172 = vmatprep.subr.mxu0 0.0
        %1173 = vmatpush1.msra.mxu0 0.0
        %1174 = vmatprep.subr.mxu0 0.0
        %1175 = vmatpush1.msra.mxu0 0.0
        %1176 = vmatprep.subr.mxu0 0.0
        %1177 = vmatpush1.msra.mxu0 0.0
        %1178 = vmatprep.subr.mxu0 0.0
        %1179 = vmatpush1.msra.mxu0 0.0
        %1180 = vmatprep.subr.mxu0 0.0
        %1181 = vmatpush1.msra.mxu0 0.0
        %1182 = vmatprep.subr.mxu0 0.0
        %1183 = vmatpush1.msra.mxu0 0.0
        %1184 = vmatprep.subr.mxu0 0.0
        %1185 = vmatpush1.msra.mxu0 0.0
        %1186 = vmatprep.subr.mxu0 0.0
        %1187 = vmatpush1.msra.mxu0 0.0
        %1188 = vmatprep.subr.mxu0 0.0
        %1189 = vmatpush1.msra.mxu0 0.0
        %1190 = vmatprep.subr.mxu0 0.0
        %1191 = vmatpush1.msra.mxu0 0.0
        %1192 = vmatprep.subr.mxu0 0.0
        %1193 = vmatpush1.msra.mxu0 0.0
        %1194 = vmatprep.subr.mxu0 0.0
        %1195 = vmatpush1.msra.mxu0 0.0
        %1196 = vmatprep.subr.mxu0 0.0
        %1197 = vmatpush1.msra.mxu0 0.0
        %1198 = vmatprep.subr.mxu0 0.0
        %1199 = vmatpush1.msra.mxu0 0.0
        %1200 = vmatprep.subr.mxu0 0.0
        %1201 = vmatpush1.msra.mxu0 0.0
        %1202 = vmatprep.subr.mxu0 0.0
        %1203 = vmatpush1.msra.mxu0 0.0
        %1204 = vmatprep.subr.mxu0 0.0
        %1205 = vmatpush1.msra.mxu0 0.0
        %1206 = vmatprep.subr.mxu0 0.0
        %1207 = vmatpush1.msra.mxu0 0.0
        %1208 = vmatprep.subr.mxu0 0.0
        %1209 = vmatpush1.msra.mxu0 0.0
        %1210 = vmatprep.subr.mxu0 0.0
        %1211 = vmatpush1.msra.mxu0 0.0
        %1212 = vmatprep.subr.mxu0 0.0
        %1213 = vmatpush1.msra.mxu0 0.0
        %1214 = vmatprep.subr.mxu0 0.0
        %1215 = vmatpush1.msra.mxu0 0.0
        %1216 = vmatprep.subr.mxu0 0.0
        %1217 = vmatpush1.msra.mxu0 0.0
        %1218 = vmatprep.mubr.f32.mxu0 0.0
        %1219 = vmatmul.mubr.f32.gmra.mrb[0].mxu0 %v1152
        %v1220 = vpop.f32.mrb[0].mxu0
        %v1221 = vadd.f32 %v1144, %v1220
        %v1222 = vpop.f32.mrb[0].mxu0
        %1223 = vdwg.mxu0
        %v1224 = vsel %vm639, %v1076, 0.0
        %1225 = vadd.xlane.f32.xlu0 %v1224
        %v1226 = vpop.xlane.xlu0 %1225
        %v1228 = vlaneseq
        %v1229 = vshrl.u32 %v1228, 7
        %v1230 = vsub.s32 0, %v1229
        %v1231 = vrot.slane %v997, %v1230
        %1232 = vrot.lane.b32.xlu0 %v1231, 8
        %v1233 = vpop.permute.xlu0 %1232
        %v1235 = vmul.f32 %v625, %v1233
        %1237 = vrot.lane.b32.xlu0 %v1235, 120
        %v1238 = vpop.permute.xlu0 %1237
        %v1240 = vsel %vm639, %v1238, 0.0
        %1241 = vadd.xlane.f32.xlu0 %v1240
        %v1242 = vpop.xlane.xlu0 %1241
        %v1243 = vadd.f32 %v1226, %v1242
        %v1244 = vadd.f32 %v1243, 1e-06
        %v1245 = vrcp.pop %v1244
        %v1246 = vmul.f32 %v1221, %v1245
        %1248 = vxpose.xlu0.b32.start [1/16] %v1001, 128
        %1249 = vxpose.xlu0.b32.cont [2/16] 0.0, 128
        %1250 = vxpose.xlu0.b32.cont [3/16] 0.0, 128
        %1251 = vxpose.xlu0.b32.cont [4/16] 0.0, 128
        %1252 = vxpose.xlu0.b32.cont [5/16] 0.0, 128
        %1253 = vxpose.xlu0.b32.cont [6/16] 0.0, 128
        %1254 = vxpose.xlu0.b32.cont [7/16] 0.0, 128
        %1255 = vxpose.xlu0.b32.cont [8/16] 0.0, 128
        %1256 = vxpose.xlu0.b32.cont [9/16] 0.0, 128
        %1257 = vxpose.xlu0.b32.cont [10/16] 0.0, 128
        %1258 = vxpose.xlu0.b32.cont [11/16] 0.0, 128
        %1259 = vxpose.xlu0.b32.cont [12/16] 0.0, 128
        %1260 = vxpose.xlu0.b32.cont [13/16] 0.0, 128
        %1261 = vxpose.xlu0.b32.cont [14/16] 0.0, 128
        %1262 = vxpose.xlu0.b32.cont [15/16] 0.0, 128
        %1263 = vxpose.xlu0.b32.end [16/16] 0.0, 128
        %v1264 = vpop.trf.xlu0
        %v1265 = vpop.trf.xlu0
        %v1266 = vpop.trf.xlu0
        %v1267 = vpop.trf.xlu0
        %v1268 = vpop.trf.xlu0
        %v1269 = vpop.trf.xlu0
        %v1270 = vpop.trf.xlu0
        %v1271 = vpop.trf.xlu0
        %v1272 = vpop.trf.xlu0
        %v1273 = vpop.trf.xlu0
        %v1274 = vpop.trf.xlu0
        %v1275 = vpop.trf.xlu0
        %v1276 = vpop.trf.xlu0
        %v1277 = vpop.trf.xlu0
        %v1278 = vpop.trf.xlu0
        %v1279 = vpop.trf.xlu0
        %v1281 = vsel %vm639, %v1264, 0
        %1283 = vmatprep.subr.mxu0 0.0
        %1284 = vmatpush1.msra.mxu0 %v1149
        %1285 = vmatprep.subr.mxu0 0.0
        %1286 = vmatpush1.msra.mxu0 0.0
        %1287 = vmatprep.subr.mxu0 0.0
        %1288 = vmatpush1.msra.mxu0 0.0
        %1289 = vmatprep.subr.mxu0 0.0
        %1290 = vmatpush1.msra.mxu0 0.0
        %1291 = vmatprep.subr.mxu0 0.0
        %1292 = vmatpush1.msra.mxu0 0.0
        %1293 = vmatprep.subr.mxu0 0.0
        %1294 = vmatpush1.msra.mxu0 0.0
        %1295 = vmatprep.subr.mxu0 0.0
        %1296 = vmatpush1.msra.mxu0 0.0
        %1297 = vmatprep.subr.mxu0 0.0
        %1298 = vmatpush1.msra.mxu0 0.0
        %1299 = vmatprep.subr.mxu0 0.0
        %1300 = vmatpush1.msra.mxu0 0.0
        %1301 = vmatprep.subr.mxu0 0.0
        %1302 = vmatpush1.msra.mxu0 0.0
        %1303 = vmatprep.subr.mxu0 0.0
        %1304 = vmatpush1.msra.mxu0 0.0
        %1305 = vmatprep.subr.mxu0 0.0
        %1306 = vmatpush1.msra.mxu0 0.0
        %1307 = vmatprep.subr.mxu0 0.0
        %1308 = vmatpush1.msra.mxu0 0.0
        %1309 = vmatprep.subr.mxu0 0.0
        %1310 = vmatpush1.msra.mxu0 0.0
        %1311 = vmatprep.subr.mxu0 0.0
        %1312 = vmatpush1.msra.mxu0 0.0
        %1313 = vmatprep.subr.mxu0 0.0
        %1314 = vmatpush1.msra.mxu0 0.0
        %1315 = vmatprep.subr.mxu0 0.0
        %1316 = vmatpush1.msra.mxu0 0.0
        %1317 = vmatprep.subr.mxu0 0.0
        %1318 = vmatpush1.msra.mxu0 0.0
        %1319 = vmatprep.subr.mxu0 0.0
        %1320 = vmatpush1.msra.mxu0 0.0
        %1321 = vmatprep.subr.mxu0 0.0
        %1322 = vmatpush1.msra.mxu0 0.0
        %1323 = vmatprep.subr.mxu0 0.0
        %1324 = vmatpush1.msra.mxu0 0.0
        %1325 = vmatprep.subr.mxu0 0.0
        %1326 = vmatpush1.msra.mxu0 0.0
        %1327 = vmatprep.subr.mxu0 0.0
        %1328 = vmatpush1.msra.mxu0 0.0
        %1329 = vmatprep.subr.mxu0 0.0
        %1330 = vmatpush1.msra.mxu0 0.0
        %1331 = vmatprep.subr.mxu0 0.0
        %1332 = vmatpush1.msra.mxu0 0.0
        %1333 = vmatprep.subr.mxu0 0.0
        %1334 = vmatpush1.msra.mxu0 0.0
        %1335 = vmatprep.subr.mxu0 0.0
        %1336 = vmatpush1.msra.mxu0 0.0
        %1337 = vmatprep.subr.mxu0 0.0
        %1338 = vmatpush1.msra.mxu0 0.0
        %1339 = vmatprep.subr.mxu0 0.0
        %1340 = vmatpush1.msra.mxu0 0.0
        %1341 = vmatprep.subr.mxu0 0.0
        %1342 = vmatpush1.msra.mxu0 0.0
        %1343 = vmatprep.subr.mxu0 0.0
        %1344 = vmatpush1.msra.mxu0 0.0
        %1345 = vmatprep.subr.mxu0 0.0
        %1346 = vmatpush1.msra.mxu0 0.0
        %1347 = vmatprep.mubr.f32.mxu0 0.0
        %1348 = vmatmul.mubr.f32.gmra.mrb[0].mxu0 %v1281
        %v1349 = vpop.f32.mrb[0].mxu0
        %v1350 = vadd.f32 0.0, %v1349
        %v1351 = vpop.f32.mrb[0].mxu0
        %1352 = vdwg.mxu0
        %v1353 = vadd.f32 %v995, %v1350
        %1354 = vst.msk [vmem:[%s994] sm:$0xff] %vm639, %v1353
        %vm1355 = vcmask 130112
        %v1356 = vsel %vm1355, %v631, 0.0
        %v1357 = vrot.slane %v1356, 4
        %v1358 = vadd.f32 %v1356, %v1357
        %v1359 = vrot.slane %v1358, 2
        %v1360 = vadd.f32 %v1358, %v1359
        %v1361 = vrot.slane %v1360, 1
        %v1362 = vadd.f32 %v1360, %v1361
        %v1365 = vunpack.c.l.s4 1966171168
        %v1366 = vunpack.c.0.s8 %v1365
        %v1367 = vlaneseq
        %v1368 = vshrl.u32 %v1367, 7
        %v1369 = vsub.s32 %v1366, %v1368
        %v1370 = vrot.slane %v1362, %v1369
        %v1372 = vunpack.c.l.s4 1966171168
        %v1373 = vunpack.c.0.s8 %v1372
        %v1374 = vlaneseq
        %v1375 = vshrl.u32 %v1374, 7
        %v1376 = vsub.s32 %v1373, %v1375
        %v1377 = vrot.slane %v1370, %v1376
        %1378 = vrot.lane.b32.xlu0 %v1377, 120
        %v1379 = vpop.permute.xlu0 %1378
        %v1381 = vadd.f32 %v997, %v1379
        %1382 = vst.msk [vmem:[%s996] sm:$0x1] %vm992, %v1381
        %s1383 = scalar_lea.vmem [#allocation2], 16
        %v1384 = vld [vmem:[%s1383] sm:$0xff]
        %s1385 = scalar_lea.vmem [#allocation3], 2
        %v1386 = vld [vmem:[%s1385] sm:$0x1]
        %1387 = vrot.lane.b32.xlu0 %v625, 112
        %v1388 = vpop.permute.xlu0 %1387
        %1389 = vrot.lane.b32.xlu0 %v631, 112
        %v1390 = vpop.permute.xlu0 %1389
        %v1391 = vsel %vm639, %v1388, 0
        %v1393 = vsel %vm639, %v1390, 0
        %1395 = vmatprep.subr.mxu0 0.0
        %1396 = vmatpush1.xpose.msra.mxu0 %v1393
        %1397 = vmatprep.subr.mxu0 0.0
        %1398 = vmatpush1.xpose.msra.mxu0 0.0
        %1399 = vmatprep.subr.mxu0 0.0
        %1400 = vmatpush1.xpose.msra.mxu0 0.0
        %1401 = vmatprep.subr.mxu0 0.0
        %1402 = vmatpush1.xpose.msra.mxu0 0.0
        %1403 = vmatprep.subr.mxu0 0.0
        %1404 = vmatpush1.xpose.msra.mxu0 0.0
        %1405 = vmatprep.subr.mxu0 0.0
        %1406 = vmatpush1.xpose.msra.mxu0 0.0
        %1407 = vmatprep.subr.mxu0 0.0
        %1408 = vmatpush1.xpose.msra.mxu0 0.0
        %1409 = vmatprep.subr.mxu0 0.0
        %1410 = vmatpush1.xpose.msra.mxu0 0.0
        %1411 = vmatprep.subr.mxu0 0.0
        %1412 = vmatpush1.xpose.msra.mxu0 0.0
        %1413 = vmatprep.subr.mxu0 0.0
        %1414 = vmatpush1.xpose.msra.mxu0 0.0
        %1415 = vmatprep.subr.mxu0 0.0
        %1416 = vmatpush1.xpose.msra.mxu0 0.0
        %1417 = vmatprep.subr.mxu0 0.0
        %1418 = vmatpush1.xpose.msra.mxu0 0.0
        %1419 = vmatprep.subr.mxu0 0.0
        %1420 = vmatpush1.xpose.msra.mxu0 0.0
        %1421 = vmatprep.subr.mxu0 0.0
        %1422 = vmatpush1.xpose.msra.mxu0 0.0
        %1423 = vmatprep.subr.mxu0 0.0
        %1424 = vmatpush1.xpose.msra.mxu0 0.0
        %1425 = vmatprep.subr.mxu0 0.0
        %1426 = vmatpush1.xpose.msra.mxu0 0.0
        %1427 = vmatprep.subr.mxu0 0.0
        %1428 = vmatpush1.xpose.msra.mxu0 0.0
        %1429 = vmatprep.subr.mxu0 0.0
        %1430 = vmatpush1.xpose.msra.mxu0 0.0
        %1431 = vmatprep.subr.mxu0 0.0
        %1432 = vmatpush1.xpose.msra.mxu0 0.0
        %1433 = vmatprep.subr.mxu0 0.0
        %1434 = vmatpush1.xpose.msra.mxu0 0.0
        %1435 = vmatprep.subr.mxu0 0.0
        %1436 = vmatpush1.xpose.msra.mxu0 0.0
        %1437 = vmatprep.subr.mxu0 0.0
        %1438 = vmatpush1.xpose.msra.mxu0 0.0
        %1439 = vmatprep.subr.mxu0 0.0
        %1440 = vmatpush1.xpose.msra.mxu0 0.0
        %1441 = vmatprep.subr.mxu0 0.0
        %1442 = vmatpush1.xpose.msra.mxu0 0.0
        %1443 = vmatprep.subr.mxu0 0.0
        %1444 = vmatpush1.xpose.msra.mxu0 0.0
        %1445 = vmatprep.subr.mxu0 0.0
        %1446 = vmatpush1.xpose.msra.mxu0 0.0
        %1447 = vmatprep.subr.mxu0 0.0
        %1448 = vmatpush1.xpose.msra.mxu0 0.0
        %1449 = vmatprep.subr.mxu0 0.0
        %1450 = vmatpush1.xpose.msra.mxu0 0.0
        %1451 = vmatprep.subr.mxu0 0.0
        %1452 = vmatpush1.xpose.msra.mxu0 0.0
        %1453 = vmatprep.subr.mxu0 0.0
        %1454 = vmatpush1.xpose.msra.mxu0 0.0
        %1455 = vmatprep.subr.mxu0 0.0
        %1456 = vmatpush1.xpose.msra.mxu0 0.0
        %1457 = vmatprep.subr.mxu0 0.0
        %1458 = vmatpush1.xpose.msra.mxu0 0.0
        %1459 = vmatprep.mubr.f32.mxu0 0.0
        %1460 = vmatmul.mubr.f32.gmra.mrb[0].mxu0 %v1391
        %v1461 = vpop.f32.mrb[0].mxu0
        %v1462 = vadd.f32 0.0, %v1461
        %v1463 = vpop.f32.mrb[0].mxu0
        %1464 = vdwg.mxu0
        %v1465 = vsel %vm636, %v1462, 0.0
        %1466 = vmatprep.subr.mxu0 0.0
        %1467 = vmatpush1.msra.mxu0 %v1384
        %1468 = vmatprep.subr.mxu0 0.0
        %1469 = vmatpush1.msra.mxu0 0.0
        %1470 = vmatprep.subr.mxu0 0.0
        %1471 = vmatpush1.msra.mxu0 0.0
        %1472 = vmatprep.subr.mxu0 0.0
        %1473 = vmatpush1.msra.mxu0 0.0
        %1474 = vmatprep.subr.mxu0 0.0
        %1475 = vmatpush1.msra.mxu0 0.0
        %1476 = vmatprep.subr.mxu0 0.0
        %1477 = vmatpush1.msra.mxu0 0.0
        %1478 = vmatprep.subr.mxu0 0.0
        %1479 = vmatpush1.msra.mxu0 0.0
        %1480 = vmatprep.subr.mxu0 0.0
        %1481 = vmatpush1.msra.mxu0 0.0
        %1482 = vmatprep.subr.mxu0 0.0
        %1483 = vmatpush1.msra.mxu0 0.0
        %1484 = vmatprep.subr.mxu0 0.0
        %1485 = vmatpush1.msra.mxu0 0.0
        %1486 = vmatprep.subr.mxu0 0.0
        %1487 = vmatpush1.msra.mxu0 0.0
        %1488 = vmatprep.subr.mxu0 0.0
        %1489 = vmatpush1.msra.mxu0 0.0
        %1490 = vmatprep.subr.mxu0 0.0
        %1491 = vmatpush1.msra.mxu0 0.0
        %1492 = vmatprep.subr.mxu0 0.0
        %1493 = vmatpush1.msra.mxu0 0.0
        %1494 = vmatprep.subr.mxu0 0.0
        %1495 = vmatpush1.msra.mxu0 0.0
        %1496 = vmatprep.subr.mxu0 0.0
        %1497 = vmatpush1.msra.mxu0 0.0
        %1498 = vmatprep.subr.mxu0 0.0
        %1499 = vmatpush1.msra.mxu0 0.0
        %1500 = vmatprep.subr.mxu0 0.0
        %1501 = vmatpush1.msra.mxu0 0.0
        %1502 = vmatprep.subr.mxu0 0.0
        %1503 = vmatpush1.msra.mxu0 0.0
        %1504 = vmatprep.subr.mxu0 0.0
        %1505 = vmatpush1.msra.mxu0 0.0
        %1506 = vmatprep.subr.mxu0 0.0
        %1507 = vmatpush1.msra.mxu0 0.0
        %1508 = vmatprep.subr.mxu0 0.0
        %1509 = vmatpush1.msra.mxu0 0.0
        %1510 = vmatprep.subr.mxu0 0.0
        %1511 = vmatpush1.msra.mxu0 0.0
        %1512 = vmatprep.subr.mxu0 0.0
        %1513 = vmatpush1.msra.mxu0 0.0
        %1514 = vmatprep.subr.mxu0 0.0
        %1515 = vmatpush1.msra.mxu0 0.0
        %1516 = vmatprep.subr.mxu0 0.0
        %1517 = vmatpush1.msra.mxu0 0.0
        %1518 = vmatprep.subr.mxu0 0.0
        %1519 = vmatpush1.msra.mxu0 0.0
        %1520 = vmatprep.subr.mxu0 0.0
        %1521 = vmatpush1.msra.mxu0 0.0
        %1522 = vmatprep.subr.mxu0 0.0
        %1523 = vmatpush1.msra.mxu0 0.0
        %1524 = vmatprep.subr.mxu0 0.0
        %1525 = vmatpush1.msra.mxu0 0.0
        %1526 = vmatprep.subr.mxu0 0.0
        %1527 = vmatpush1.msra.mxu0 0.0
        %1528 = vmatprep.subr.mxu0 0.0
        %1529 = vmatpush1.msra.mxu0 0.0
        %1530 = vmatprep.mubr.f32.mxu0 0.0
        %1531 = vmatmul.mubr.f32.gmra.mrb[0].mxu0 %v1391
        %v1532 = vpop.f32.mrb[0].mxu0
        %v1533 = vadd.f32 0.0, %v1532
        %v1534 = vpop.f32.mrb[0].mxu0
        %1535 = vdwg.mxu0
        %1536 = vrot.lane.b32.xlu0 %v614, 112
        %v1537 = vpop.permute.xlu0 %1536
        %v1540 = vsel %vm639, %v1465, 0
        %1542 = vmatprep.subr.mxu0 0.0
        %1543 = vmatpush1.msra.mxu0 %v1537
        %1544 = vmatprep.subr.mxu0 0.0
        %1545 = vmatpush1.msra.mxu0 0.0
        %1546 = vmatprep.subr.mxu0 0.0
        %1547 = vmatpush1.msra.mxu0 0.0
        %1548 = vmatprep.subr.mxu0 0.0
        %1549 = vmatpush1.msra.mxu0 0.0
        %1550 = vmatprep.subr.mxu0 0.0
        %1551 = vmatpush1.msra.mxu0 0.0
        %1552 = vmatprep.subr.mxu0 0.0
        %1553 = vmatpush1.msra.mxu0 0.0
        %1554 = vmatprep.subr.mxu0 0.0
        %1555 = vmatpush1.msra.mxu0 0.0
        %1556 = vmatprep.subr.mxu0 0.0
        %1557 = vmatpush1.msra.mxu0 0.0
        %1558 = vmatprep.subr.mxu0 0.0
        %1559 = vmatpush1.msra.mxu0 0.0
        %1560 = vmatprep.subr.mxu0 0.0
        %1561 = vmatpush1.msra.mxu0 0.0
        %1562 = vmatprep.subr.mxu0 0.0
        %1563 = vmatpush1.msra.mxu0 0.0
        %1564 = vmatprep.subr.mxu0 0.0
        %1565 = vmatpush1.msra.mxu0 0.0
        %1566 = vmatprep.subr.mxu0 0.0
        %1567 = vmatpush1.msra.mxu0 0.0
        %1568 = vmatprep.subr.mxu0 0.0
        %1569 = vmatpush1.msra.mxu0 0.0
        %1570 = vmatprep.subr.mxu0 0.0
        %1571 = vmatpush1.msra.mxu0 0.0
        %1572 = vmatprep.subr.mxu0 0.0
        %1573 = vmatpush1.msra.mxu0 0.0
        %1574 = vmatprep.subr.mxu0 0.0
        %1575 = vmatpush1.msra.mxu0 0.0
        %1576 = vmatprep.subr.mxu0 0.0
        %1577 = vmatpush1.msra.mxu0 0.0
        %1578 = vmatprep.subr.mxu0 0.0
        %1579 = vmatpush1.msra.mxu0 0.0
        %1580 = vmatprep.subr.mxu0 0.0
        %1581 = vmatpush1.msra.mxu0 0.0
        %1582 = vmatprep.subr.mxu0 0.0
        %1583 = vmatpush1.msra.mxu0 0.0
        %1584 = vmatprep.subr.mxu0 0.0
        %1585 = vmatpush1.msra.mxu0 0.0
        %1586 = vmatprep.subr.mxu0 0.0
        %1587 = vmatpush1.msra.mxu0 0.0
        %1588 = vmatprep.subr.mxu0 0.0
        %1589 = vmatpush1.msra.mxu0 0.0
        %1590 = vmatprep.subr.mxu0 0.0
        %1591 = vmatpush1.msra.mxu0 0.0
        %1592 = vmatprep.subr.mxu0 0.0
        %1593 = vmatpush1.msra.mxu0 0.0
        %1594 = vmatprep.subr.mxu0 0.0
        %1595 = vmatpush1.msra.mxu0 0.0
        %1596 = vmatprep.subr.mxu0 0.0
        %1597 = vmatpush1.msra.mxu0 0.0
        %1598 = vmatprep.subr.mxu0 0.0
        %1599 = vmatpush1.msra.mxu0 0.0
        %1600 = vmatprep.subr.mxu0 0.0
        %1601 = vmatpush1.msra.mxu0 0.0
        %1602 = vmatprep.subr.mxu0 0.0
        %1603 = vmatpush1.msra.mxu0 0.0
        %1604 = vmatprep.subr.mxu0 0.0
        %1605 = vmatpush1.msra.mxu0 0.0
        %1606 = vmatprep.mubr.f32.mxu0 0.0
        %1607 = vmatmul.mubr.f32.gmra.mrb[0].mxu0 %v1540
        %v1608 = vpop.f32.mrb[0].mxu0
        %v1609 = vadd.f32 %v1533, %v1608
        %v1610 = vpop.f32.mrb[0].mxu0
        %1611 = vdwg.mxu0
        %v1612 = vsel %vm639, %v1465, 0.0
        %1613 = vadd.xlane.f32.xlu0 %v1612
        %v1614 = vpop.xlane.xlu0 %1613
        %v1616 = vlaneseq
        %v1617 = vshrl.u32 %v1616, 7
        %v1618 = vsub.s32 0, %v1617
        %v1619 = vrot.slane %v1386, %v1618
        %1620 = vrot.lane.b32.xlu0 %v1619, 16
        %v1621 = vpop.permute.xlu0 %1620
        %v1623 = vmul.f32 %v625, %v1621
        %1625 = vrot.lane.b32.xlu0 %v1623, 112
        %v1626 = vpop.permute.xlu0 %1625
        %v1628 = vsel %vm639, %v1626, 0.0
        %1629 = vadd.xlane.f32.xlu0 %v1628
        %v1630 = vpop.xlane.xlu0 %1629
        %v1631 = vadd.f32 %v1614, %v1630
        %v1632 = vadd.f32 %v1631, 1e-06
        %v1633 = vrcp.pop %v1632
        %v1634 = vmul.f32 %v1609, %v1633
        %1636 = vxpose.xlu0.b32.start [1/16] %v1390, 128
        %1637 = vxpose.xlu0.b32.cont [2/16] 0.0, 128
        %1638 = vxpose.xlu0.b32.cont [3/16] 0.0, 128
        %1639 = vxpose.xlu0.b32.cont [4/16] 0.0, 128
        %1640 = vxpose.xlu0.b32.cont [5/16] 0.0, 128
        %1641 = vxpose.xlu0.b32.cont [6/16] 0.0, 128
        %1642 = vxpose.xlu0.b32.cont [7/16] 0.0, 128
        %1643 = vxpose.xlu0.b32.cont [8/16] 0.0, 128
        %1644 = vxpose.xlu0.b32.cont [9/16] 0.0, 128
        %1645 = vxpose.xlu0.b32.cont [10/16] 0.0, 128
        %1646 = vxpose.xlu0.b32.cont [11/16] 0.0, 128
        %1647 = vxpose.xlu0.b32.cont [12/16] 0.0, 128
        %1648 = vxpose.xlu0.b32.cont [13/16] 0.0, 128
        %1649 = vxpose.xlu0.b32.cont [14/16] 0.0, 128
        %1650 = vxpose.xlu0.b32.cont [15/16] 0.0, 128
        %1651 = vxpose.xlu0.b32.end [16/16] 0.0, 128
        %v1652 = vpop.trf.xlu0
        %v1653 = vpop.trf.xlu0
        %v1654 = vpop.trf.xlu0
        %v1655 = vpop.trf.xlu0
        %v1656 = vpop.trf.xlu0
        %v1657 = vpop.trf.xlu0
        %v1658 = vpop.trf.xlu0
        %v1659 = vpop.trf.xlu0
        %v1660 = vpop.trf.xlu0
        %v1661 = vpop.trf.xlu0
        %v1662 = vpop.trf.xlu0
        %v1663 = vpop.trf.xlu0
        %v1664 = vpop.trf.xlu0
        %v1665 = vpop.trf.xlu0
        %v1666 = vpop.trf.xlu0
        %v1667 = vpop.trf.xlu0
        %v1669 = vsel %vm639, %v1652, 0
        %1671 = vmatprep.subr.mxu0 0.0
        %1672 = vmatpush1.msra.mxu0 %v1537
        %1673 = vmatprep.subr.mxu0 0.0
        %1674 = vmatpush1.msra.mxu0 0.0
        %1675 = vmatprep.subr.mxu0 0.0
        %1676 = vmatpush1.msra.mxu0 0.0
        %1677 = vmatprep.subr.mxu0 0.0
        %1678 = vmatpush1.msra.mxu0 0.0
        %1679 = vmatprep.subr.mxu0 0.0
        %1680 = vmatpush1.msra.mxu0 0.0
        %1681 = vmatprep.subr.mxu0 0.0
        %1682 = vmatpush1.msra.mxu0 0.0
        %1683 = vmatprep.subr.mxu0 0.0
        %1684 = vmatpush1.msra.mxu0 0.0
        %1685 = vmatprep.subr.mxu0 0.0
        %1686 = vmatpush1.msra.mxu0 0.0
        %1687 = vmatprep.subr.mxu0 0.0
        %1688 = vmatpush1.msra.mxu0 0.0
        %1689 = vmatprep.subr.mxu0 0.0
        %1690 = vmatpush1.msra.mxu0 0.0
        %1691 = vmatprep.subr.mxu0 0.0
        %1692 = vmatpush1.msra.mxu0 0.0
        %1693 = vmatprep.subr.mxu0 0.0
        %1694 = vmatpush1.msra.mxu0 0.0
        %1695 = vmatprep.subr.mxu0 0.0
        %1696 = vmatpush1.msra.mxu0 0.0
        %1697 = vmatprep.subr.mxu0 0.0
        %1698 = vmatpush1.msra.mxu0 0.0
        %1699 = vmatprep.subr.mxu0 0.0
        %1700 = vmatpush1.msra.mxu0 0.0
        %1701 = vmatprep.subr.mxu0 0.0
        %1702 = vmatpush1.msra.mxu0 0.0
        %1703 = vmatprep.subr.mxu0 0.0
        %1704 = vmatpush1.msra.mxu0 0.0
        %1705 = vmatprep.subr.mxu0 0.0
        %1706 = vmatpush1.msra.mxu0 0.0
        %1707 = vmatprep.subr.mxu0 0.0
        %1708 = vmatpush1.msra.mxu0 0.0
        %1709 = vmatprep.subr.mxu0 0.0
        %1710 = vmatpush1.msra.mxu0 0.0
        %1711 = vmatprep.subr.mxu0 0.0
        %1712 = vmatpush1.msra.mxu0 0.0
        %1713 = vmatprep.subr.mxu0 0.0
        %1714 = vmatpush1.msra.mxu0 0.0
        %1715 = vmatprep.subr.mxu0 0.0
        %1716 = vmatpush1.msra.mxu0 0.0
        %1717 = vmatprep.subr.mxu0 0.0
        %1718 = vmatpush1.msra.mxu0 0.0
        %1719 = vmatprep.subr.mxu0 0.0
        %1720 = vmatpush1.msra.mxu0 0.0
        %1721 = vmatprep.subr.mxu0 0.0
        %1722 = vmatpush1.msra.mxu0 0.0
        %1723 = vmatprep.subr.mxu0 0.0
        %1724 = vmatpush1.msra.mxu0 0.0
        %1725 = vmatprep.subr.mxu0 0.0
        %1726 = vmatpush1.msra.mxu0 0.0
        %1727 = vmatprep.subr.mxu0 0.0
        %1728 = vmatpush1.msra.mxu0 0.0
        %1729 = vmatprep.subr.mxu0 0.0
        %1730 = vmatpush1.msra.mxu0 0.0
        %1731 = vmatprep.subr.mxu0 0.0
        %1732 = vmatpush1.msra.mxu0 0.0
        %1733 = vmatprep.subr.mxu0 0.0
        %1734 = vmatpush1.msra.mxu0 0.0
        %1735 = vmatprep.mubr.f32.mxu0 0.0
        %1736 = vmatmul.mubr.f32.gmra.mrb[0].mxu0 %v1669
        %v1737 = vpop.f32.mrb[0].mxu0
        %v1738 = vadd.f32 0.0, %v1737
        %v1739 = vpop.f32.mrb[0].mxu0
        %1740 = vdwg.mxu0
        %v1741 = vadd.f32 %v1384, %v1738
        %1742 = vst.msk [vmem:[%s1383] sm:$0xff] %vm639, %v1741
        %vm1743 = vcmask 195712
        %v1744 = vsel %vm1743, %v631, 0.0
        %v1745 = vrot.slane %v1744, 4
        %v1746 = vadd.f32 %v1744, %v1745
        %v1747 = vrot.slane %v1746, 2
        %v1748 = vadd.f32 %v1746, %v1747
        %v1749 = vrot.slane %v1748, 1
        %v1750 = vadd.f32 %v1748, %v1749
        %v1753 = vunpack.c.l.s4 1966171168
        %v1754 = vunpack.c.0.s8 %v1753
        %v1755 = vlaneseq
        %v1756 = vshrl.u32 %v1755, 7
        %v1757 = vsub.s32 %v1754, %v1756
        %v1758 = vrot.slane %v1750, %v1757
        %v1760 = vunpack.c.l.s4 1966171168
        %v1761 = vunpack.c.0.s8 %v1760
        %v1762 = vlaneseq
        %v1763 = vshrl.u32 %v1762, 7
        %v1764 = vsub.s32 %v1761, %v1763
        %v1765 = vrot.slane %v1758, %v1764
        %1766 = vrot.lane.b32.xlu0 %v1765, 112
        %v1767 = vpop.permute.xlu0 %1766
        %v1769 = vadd.f32 %v1386, %v1767
        %1770 = vst.msk [vmem:[%s1385] sm:$0x1] %vm992, %v1769
        %s1771 = scalar_lea.vmem [#allocation2], 24
        %v1772 = vld [vmem:[%s1771] sm:$0xff]
        %s1773 = scalar_lea.vmem [#allocation3], 3
        %v1774 = vld [vmem:[%s1773] sm:$0x1]
        %1775 = vrot.lane.b32.xlu0 %v625, 104
        %v1776 = vpop.permute.xlu0 %1775
        %1777 = vrot.lane.b32.xlu0 %v631, 104
        %v1778 = vpop.permute.xlu0 %1777
        %v1779 = vsel %vm639, %v1776, 0
        %v1781 = vsel %vm639, %v1778, 0
        %1783 = vmatprep.subr.mxu0 0.0
        %1784 = vmatpush1.xpose.msra.mxu0 %v1781
        %1785 = vmatprep.subr.mxu0 0.0
        %1786 = vmatpush1.xpose.msra.mxu0 0.0
        %1787 = vmatprep.subr.mxu0 0.0
        %1788 = vmatpush1.xpose.msra.mxu0 0.0
        %1789 = vmatprep.subr.mxu0 0.0
        %1790 = vmatpush1.xpose.msra.mxu0 0.0
        %1791 = vmatprep.subr.mxu0 0.0
        %1792 = vmatpush1.xpose.msra.mxu0 0.0
        %1793 = vmatprep.subr.mxu0 0.0
        %1794 = vmatpush1.xpose.msra.mxu0 0.0
        %1795 = vmatprep.subr.mxu0 0.0
        %1796 = vmatpush1.xpose.msra.mxu0 0.0
        %1797 = vmatprep.subr.mxu0 0.0
        %1798 = vmatpush1.xpose.msra.mxu0 0.0
        %1799 = vmatprep.subr.mxu0 0.0
        %1800 = vmatpush1.xpose.msra.mxu0 0.0
        %1801 = vmatprep.subr.mxu0 0.0
        %1802 = vmatpush1.xpose.msra.mxu0 0.0
        %1803 = vmatprep.subr.mxu0 0.0
        %1804 = vmatpush1.xpose.msra.mxu0 0.0
        %1805 = vmatprep.subr.mxu0 0.0
        %1806 = vmatpush1.xpose.msra.mxu0 0.0
        %1807 = vmatprep.subr.mxu0 0.0
        %1808 = vmatpush1.xpose.msra.mxu0 0.0
        %1809 = vmatprep.subr.mxu0 0.0
        %1810 = vmatpush1.xpose.msra.mxu0 0.0
        %1811 = vmatprep.subr.mxu0 0.0
        %1812 = vmatpush1.xpose.msra.mxu0 0.0
        %1813 = vmatprep.subr.mxu0 0.0
        %1814 = vmatpush1.xpose.msra.mxu0 0.0
        %1815 = vmatprep.subr.mxu0 0.0
        %1816 = vmatpush1.xpose.msra.mxu0 0.0
        %1817 = vmatprep.subr.mxu0 0.0
        %1818 = vmatpush1.xpose.msra.mxu0 0.0
        %1819 = vmatprep.subr.mxu0 0.0
        %1820 = vmatpush1.xpose.msra.mxu0 0.0
        %1821 = vmatprep.subr.mxu0 0.0
        %1822 = vmatpush1.xpose.msra.mxu0 0.0
        %1823 = vmatprep.subr.mxu0 0.0
        %1824 = vmatpush1.xpose.msra.mxu0 0.0
        %1825 = vmatprep.subr.mxu0 0.0
        %1826 = vmatpush1.xpose.msra.mxu0 0.0
        %1827 = vmatprep.subr.mxu0 0.0
        %1828 = vmatpush1.xpose.msra.mxu0 0.0
        %1829 = vmatprep.subr.mxu0 0.0
        %1830 = vmatpush1.xpose.msra.mxu0 0.0
        %1831 = vmatprep.subr.mxu0 0.0
        %1832 = vmatpush1.xpose.msra.mxu0 0.0
        %1833 = vmatprep.subr.mxu0 0.0
        %1834 = vmatpush1.xpose.msra.mxu0 0.0
        %1835 = vmatprep.subr.mxu0 0.0
        %1836 = vmatpush1.xpose.msra.mxu0 0.0
        %1837 = vmatprep.subr.mxu0 0.0
        %1838 = vmatpush1.xpose.msra.mxu0 0.0
        %1839 = vmatprep.subr.mxu0 0.0
        %1840 = vmatpush1.xpose.msra.mxu0 0.0
        %1841 = vmatprep.subr.mxu0 0.0
        %1842 = vmatpush1.xpose.msra.mxu0 0.0
        %1843 = vmatprep.subr.mxu0 0.0
        %1844 = vmatpush1.xpose.msra.mxu0 0.0
        %1845 = vmatprep.subr.mxu0 0.0
        %1846 = vmatpush1.xpose.msra.mxu0 0.0
        %1847 = vmatprep.mubr.f32.mxu0 0.0
        %1848 = vmatmul.mubr.f32.gmra.mrb[0].mxu0 %v1779
        %v1849 = vpop.f32.mrb[0].mxu0
        %v1850 = vadd.f32 0.0, %v1849
        %v1851 = vpop.f32.mrb[0].mxu0
        %1852 = vdwg.mxu0
        %v1853 = vsel %vm636, %v1850, 0.0
        %1854 = vmatprep.subr.mxu0 0.0
        %1855 = vmatpush1.msra.mxu0 %v1772
        %1856 = vmatprep.subr.mxu0 0.0
        %1857 = vmatpush1.msra.mxu0 0.0
        %1858 = vmatprep.subr.mxu0 0.0
        %1859 = vmatpush1.msra.mxu0 0.0
        %1860 = vmatprep.subr.mxu0 0.0
        %1861 = vmatpush1.msra.mxu0 0.0
        %1862 = vmatprep.subr.mxu0 0.0
        %1863 = vmatpush1.msra.mxu0 0.0
        %1864 = vmatprep.subr.mxu0 0.0
        %1865 = vmatpush1.msra.mxu0 0.0
        %1866 = vmatprep.subr.mxu0 0.0
        %1867 = vmatpush1.msra.mxu0 0.0
        %1868 = vmatprep.subr.mxu0 0.0
        %1869 = vmatpush1.msra.mxu0 0.0
        %1870 = vmatprep.subr.mxu0 0.0
        %1871 = vmatpush1.msra.mxu0 0.0
        %1872 = vmatprep.subr.mxu0 0.0
        %1873 = vmatpush1.msra.mxu0 0.0
        %1874 = vmatprep.subr.mxu0 0.0
        %1875 = vmatpush1.msra.mxu0 0.0
        %1876 = vmatprep.subr.mxu0 0.0
        %1877 = vmatpush1.msra.mxu0 0.0
        %1878 = vmatprep.subr.mxu0 0.0
        %1879 = vmatpush1.msra.mxu0 0.0
        %1880 = vmatprep.subr.mxu0 0.0
        %1881 = vmatpush1.msra.mxu0 0.0
        %1882 = vmatprep.subr.mxu0 0.0
        %1883 = vmatpush1.msra.mxu0 0.0
        %1884 = vmatprep.subr.mxu0 0.0
        %1885 = vmatpush1.msra.mxu0 0.0
        %1886 = vmatprep.subr.mxu0 0.0
        %1887 = vmatpush1.msra.mxu0 0.0
        %1888 = vmatprep.subr.mxu0 0.0
        %1889 = vmatpush1.msra.mxu0 0.0
        %1890 = vmatprep.subr.mxu0 0.0
        %1891 = vmatpush1.msra.mxu0 0.0
        %1892 = vmatprep.subr.mxu0 0.0
        %1893 = vmatpush1.msra.mxu0 0.0
        %1894 = vmatprep.subr.mxu0 0.0
        %1895 = vmatpush1.msra.mxu0 0.0
        %1896 = vmatprep.subr.mxu0 0.0
        %1897 = vmatpush1.msra.mxu0 0.0
        %1898 = vmatprep.subr.mxu0 0.0
        %1899 = vmatpush1.msra.mxu0 0.0
        %1900 = vmatprep.subr.mxu0 0.0
        %1901 = vmatpush1.msra.mxu0 0.0
        %1902 = vmatprep.subr.mxu0 0.0
        %1903 = vmatpush1.msra.mxu0 0.0
        %1904 = vmatprep.subr.mxu0 0.0
        %1905 = vmatpush1.msra.mxu0 0.0
        %1906 = vmatprep.subr.mxu0 0.0
        %1907 = vmatpush1.msra.mxu0 0.0
        %1908 = vmatprep.subr.mxu0 0.0
        %1909 = vmatpush1.msra.mxu0 0.0
        %1910 = vmatprep.subr.mxu0 0.0
        %1911 = vmatpush1.msra.mxu0 0.0
        %1912 = vmatprep.subr.mxu0 0.0
        %1913 = vmatpush1.msra.mxu0 0.0
        %1914 = vmatprep.subr.mxu0 0.0
        %1915 = vmatpush1.msra.mxu0 0.0
        %1916 = vmatprep.subr.mxu0 0.0
        %1917 = vmatpush1.msra.mxu0 0.0
        %1918 = vmatprep.mubr.f32.mxu0 0.0
        %1919 = vmatmul.mubr.f32.gmra.mrb[0].mxu0 %v1779
        %v1920 = vpop.f32.mrb[0].mxu0
        %v1921 = vadd.f32 0.0, %v1920
        %v1922 = vpop.f32.mrb[0].mxu0
        %1923 = vdwg.mxu0
        %1924 = vrot.lane.b32.xlu0 %v614, 104
        %v1925 = vpop.permute.xlu0 %1924
        %v1928 = vsel %vm639, %v1853, 0
        %1930 = vmatprep.subr.mxu0 0.0
        %1931 = vmatpush1.msra.mxu0 %v1925
        %1932 = vmatprep.subr.mxu0 0.0
        %1933 = vmatpush1.msra.mxu0 0.0
        %1934 = vmatprep.subr.mxu0 0.0
        %1935 = vmatpush1.msra.mxu0 0.0
        %1936 = vmatprep.subr.mxu0 0.0
        %1937 = vmatpush1.msra.mxu0 0.0
        %1938 = vmatprep.subr.mxu0 0.0
        %1939 = vmatpush1.msra.mxu0 0.0
        %1940 = vmatprep.subr.mxu0 0.0
        %1941 = vmatpush1.msra.mxu0 0.0
        %1942 = vmatprep.subr.mxu0 0.0
        %1943 = vmatpush1.msra.mxu0 0.0
        %1944 = vmatprep.subr.mxu0 0.0
        %1945 = vmatpush1.msra.mxu0 0.0
        %1946 = vmatprep.subr.mxu0 0.0
        %1947 = vmatpush1.msra.mxu0 0.0
        %1948 = vmatprep.subr.mxu0 0.0
        %1949 = vmatpush1.msra.mxu0 0.0
        %1950 = vmatprep.subr.mxu0 0.0
        %1951 = vmatpush1.msra.mxu0 0.0
        %1952 = vmatprep.subr.mxu0 0.0
        %1953 = vmatpush1.msra.mxu0 0.0
        %1954 = vmatprep.subr.mxu0 0.0
        %1955 = vmatpush1.msra.mxu0 0.0
        %1956 = vmatprep.subr.mxu0 0.0
        %1957 = vmatpush1.msra.mxu0 0.0
        %1958 = vmatprep.subr.mxu0 0.0
        %1959 = vmatpush1.msra.mxu0 0.0
        %1960 = vmatprep.subr.mxu0 0.0
        %1961 = vmatpush1.msra.mxu0 0.0
        %1962 = vmatprep.subr.mxu0 0.0
        %1963 = vmatpush1.msra.mxu0 0.0
        %1964 = vmatprep.subr.mxu0 0.0
        %1965 = vmatpush1.msra.mxu0 0.0
        %1966 = vmatprep.subr.mxu0 0.0
        %1967 = vmatpush1.msra.mxu0 0.0
        %1968 = vmatprep.subr.mxu0 0.0
        %1969 = vmatpush1.msra.mxu0 0.0
        %1970 = vmatprep.subr.mxu0 0.0
        %1971 = vmatpush1.msra.mxu0 0.0
        %1972 = vmatprep.subr.mxu0 0.0
        %1973 = vmatpush1.msra.mxu0 0.0
        %1974 = vmatprep.subr.mxu0 0.0
        %1975 = vmatpush1.msra.mxu0 0.0
        %1976 = vmatprep.subr.mxu0 0.0
        %1977 = vmatpush1.msra.mxu0 0.0
        %1978 = vmatprep.subr.mxu0 0.0
        %1979 = vmatpush1.msra.mxu0 0.0
        %1980 = vmatprep.subr.mxu0 0.0
        %1981 = vmatpush1.msra.mxu0 0.0
        %1982 = vmatprep.subr.mxu0 0.0
        %1983 = vmatpush1.msra.mxu0 0.0
        %1984 = vmatprep.subr.mxu0 0.0
        %1985 = vmatpush1.msra.mxu0 0.0
        %1986 = vmatprep.subr.mxu0 0.0
        %1987 = vmatpush1.msra.mxu0 0.0
        %1988 = vmatprep.subr.mxu0 0.0
        %1989 = vmatpush1.msra.mxu0 0.0
        %1990 = vmatprep.subr.mxu0 0.0
        %1991 = vmatpush1.msra.mxu0 0.0
        %1992 = vmatprep.subr.mxu0 0.0
        %1993 = vmatpush1.msra.mxu0 0.0
        %1994 = vmatprep.mubr.f32.mxu0 0.0
        %1995 = vmatmul.mubr.f32.gmra.mrb[0].mxu0 %v1928
        %v1996 = vpop.f32.mrb[0].mxu0
        %v1997 = vadd.f32 %v1921, %v1996
        %v1998 = vpop.f32.mrb[0].mxu0
        %1999 = vdwg.mxu0
        %v2000 = vsel %vm639, %v1853, 0.0
        %2001 = vadd.xlane.f32.xlu0 %v2000
        %v2002 = vpop.xlane.xlu0 %2001
        %v2004 = vlaneseq
        %v2005 = vshrl.u32 %v2004, 7
        %v2006 = vsub.s32 0, %v2005
        %v2007 = vrot.slane %v1774, %v2006
        %2008 = vrot.lane.b32.xlu0 %v2007, 24
        %v2009 = vpop.permute.xlu0 %2008
        %v2011 = vmul.f32 %v625, %v2009
        %2013 = vrot.lane.b32.xlu0 %v2011, 104
        %v2014 = vpop.permute.xlu0 %2013
        %v2016 = vsel %vm639, %v2014, 0.0
        %2017 = vadd.xlane.f32.xlu0 %v2016
        %v2018 = vpop.xlane.xlu0 %2017
        %v2019 = vadd.f32 %v2002, %v2018
        %v2020 = vadd.f32 %v2019, 1e-06
        %v2021 = vrcp.pop %v2020
        %v2022 = vmul.f32 %v1997, %v2021
        %2024 = vxpose.xlu0.b32.start [1/16] %v1778, 128
        %2025 = vxpose.xlu0.b32.cont [2/16] 0.0, 128
        %2026 = vxpose.xlu0.b32.cont [3/16] 0.0, 128
        %2027 = vxpose.xlu0.b32.cont [4/16] 0.0, 128
        %2028 = vxpose.xlu0.b32.cont [5/16] 0.0, 128
        %2029 = vxpose.xlu0.b32.cont [6/16] 0.0, 128
        %2030 = vxpose.xlu0.b32.cont [7/16] 0.0, 128
        %2031 = vxpose.xlu0.b32.cont [8/16] 0.0, 128
        %2032 = vxpose.xlu0.b32.cont [9/16] 0.0, 128
        %2033 = vxpose.xlu0.b32.cont [10/16] 0.0, 128
        %2034 = vxpose.xlu0.b32.cont [11/16] 0.0, 128
        %2035 = vxpose.xlu0.b32.cont [12/16] 0.0, 128
        %2036 = vxpose.xlu0.b32.cont [13/16] 0.0, 128
        %2037 = vxpose.xlu0.b32.cont [14/16] 0.0, 128
        %2038 = vxpose.xlu0.b32.cont [15/16] 0.0, 128
        %2039 = vxpose.xlu0.b32.end [16/16] 0.0, 128
        %v2040 = vpop.trf.xlu0
        %v2041 = vpop.trf.xlu0
        %v2042 = vpop.trf.xlu0
        %v2043 = vpop.trf.xlu0
        %v2044 = vpop.trf.xlu0
        %v2045 = vpop.trf.xlu0
        %v2046 = vpop.trf.xlu0
        %v2047 = vpop.trf.xlu0
        %v2048 = vpop.trf.xlu0
        %v2049 = vpop.trf.xlu0
        %v2050 = vpop.trf.xlu0
        %v2051 = vpop.trf.xlu0
        %v2052 = vpop.trf.xlu0
        %v2053 = vpop.trf.xlu0
        %v2054 = vpop.trf.xlu0
        %v2055 = vpop.trf.xlu0
        %v2057 = vsel %vm639, %v2040, 0
        %2059 = vmatprep.subr.mxu0 0.0
        %2060 = vmatpush1.msra.mxu0 %v1925
        %2061 = vmatprep.subr.mxu0 0.0
        %2062 = vmatpush1.msra.mxu0 0.0
        %2063 = vmatprep.subr.mxu0 0.0
        %2064 = vmatpush1.msra.mxu0 0.0
        %2065 = vmatprep.subr.mxu0 0.0
        %2066 = vmatpush1.msra.mxu0 0.0
        %2067 = vmatprep.subr.mxu0 0.0
        %2068 = vmatpush1.msra.mxu0 0.0
        %2069 = vmatprep.subr.mxu0 0.0
        %2070 = vmatpush1.msra.mxu0 0.0
        %2071 = vmatprep.subr.mxu0 0.0
        %2072 = vmatpush1.msra.mxu0 0.0
        %2073 = vmatprep.subr.mxu0 0.0
        %2074 = vmatpush1.msra.mxu0 0.0
        %2075 = vmatprep.subr.mxu0 0.0
        %2076 = vmatpush1.msra.mxu0 0.0
        %2077 = vmatprep.subr.mxu0 0.0
        %2078 = vmatpush1.msra.mxu0 0.0
        %2079 = vmatprep.subr.mxu0 0.0
        %2080 = vmatpush1.msra.mxu0 0.0
        %2081 = vmatprep.subr.mxu0 0.0
        %2082 = vmatpush1.msra.mxu0 0.0
        %2083 = vmatprep.subr.mxu0 0.0
        %2084 = vmatpush1.msra.mxu0 0.0
        %2085 = vmatprep.subr.mxu0 0.0
        %2086 = vmatpush1.msra.mxu0 0.0
        %2087 = vmatprep.subr.mxu0 0.0
        %2088 = vmatpush1.msra.mxu0 0.0
        %2089 = vmatprep.subr.mxu0 0.0
        %2090 = vmatpush1.msra.mxu0 0.0
        %2091 = vmatprep.subr.mxu0 0.0
        %2092 = vmatpush1.msra.mxu0 0.0
        %2093 = vmatprep.subr.mxu0 0.0
        %2094 = vmatpush1.msra.mxu0 0.0
        %2095 = vmatprep.subr.mxu0 0.0
        %2096 = vmatpush1.msra.mxu0 0.0
        %2097 = vmatprep.subr.mxu0 0.0
        %2098 = vmatpush1.msra.mxu0 0.0
        %2099 = vmatprep.subr.mxu0 0.0
        %2100 = vmatpush1.msra.mxu0 0.0
        %2101 = vmatprep.subr.mxu0 0.0
        %2102 = vmatpush1.msra.mxu0 0.0
        %2103 = vmatprep.subr.mxu0 0.0
        %2104 = vmatpush1.msra.mxu0 0.0
        %2105 = vmatprep.subr.mxu0 0.0
        %2106 = vmatpush1.msra.mxu0 0.0
        %2107 = vmatprep.subr.mxu0 0.0
        %2108 = vmatpush1.msra.mxu0 0.0
        %2109 = vmatprep.subr.mxu0 0.0
        %2110 = vmatpush1.msra.mxu0 0.0
        %2111 = vmatprep.subr.mxu0 0.0
        %2112 = vmatpush1.msra.mxu0 0.0
        %2113 = vmatprep.subr.mxu0 0.0
        %2114 = vmatpush1.msra.mxu0 0.0
        %2115 = vmatprep.subr.mxu0 0.0
        %2116 = vmatpush1.msra.mxu0 0.0
        %2117 = vmatprep.subr.mxu0 0.0
        %2118 = vmatpush1.msra.mxu0 0.0
        %2119 = vmatprep.subr.mxu0 0.0
        %2120 = vmatpush1.msra.mxu0 0.0
        %2121 = vmatprep.subr.mxu0 0.0
        %2122 = vmatpush1.msra.mxu0 0.0
        %2123 = vmatprep.mubr.f32.mxu0 0.0
        %2124 = vmatmul.mubr.f32.gmra.mrb[0].mxu0 %v2057
        %v2125 = vpop.f32.mrb[0].mxu0
        %v2126 = vadd.f32 0.0, %v2125
        %v2127 = vpop.f32.mrb[0].mxu0
        %2128 = vdwg.mxu0
        %v2129 = vadd.f32 %v1772, %v2126
        %2130 = vst.msk [vmem:[%s1771] sm:$0xff] %vm639, %v2129
        %vm2131 = vcmask 261312
        %v2132 = vsel %vm2131, %v631, 0.0
        %v2133 = vrot.slane %v2132, 4
        %v2134 = vadd.f32 %v2132, %v2133
        %v2135 = vrot.slane %v2134, 2
        %v2136 = vadd.f32 %v2134, %v2135
        %v2137 = vrot.slane %v2136, 1
        %v2138 = vadd.f32 %v2136, %v2137
        %v2141 = vunpack.c.l.s4 1966171168
        %v2142 = vunpack.c.0.s8 %v2141
        %v2143 = vlaneseq
        %v2144 = vshrl.u32 %v2143, 7
        %v2145 = vsub.s32 %v2142, %v2144
        %v2146 = vrot.slane %v2138, %v2145
        %v2148 = vunpack.c.l.s4 1966171168
        %v2149 = vunpack.c.0.s8 %v2148
        %v2150 = vlaneseq
        %v2151 = vshrl.u32 %v2150, 7
        %v2152 = vsub.s32 %v2149, %v2151
        %v2153 = vrot.slane %v2146, %v2152
        %2154 = vrot.lane.b32.xlu0 %v2153, 104
        %v2155 = vpop.permute.xlu0 %2154
        %v2157 = vadd.f32 %v1774, %v2155
        %2158 = vst.msk [vmem:[%s1773] sm:$0x1] %vm992, %v2157
        %2160 = vrot.lane.b32.xlu0 %v1246, 8
        %v2161 = vpop.permute.xlu0 %2160
        %2164 = vrot.lane.b32.xlu0 %v1634, 16
        %v2165 = vpop.permute.xlu0 %2164
        %2168 = vrot.lane.b32.xlu0 %v2022, 24
        %v2169 = vpop.permute.xlu0 %2168
        %v2171 = vsel %vm639, %v876, %v2161
        %vm2172 = vcmask 130048
        %v2173 = vsel %vm2172, %v2171, %v2165
        %vm2174 = vcmask 195584
        %v2175 = vsel %vm2174, %v2173, %v2169
        %v2176 = vpack.c.bf16 %v2175, %v2175
        %v2177 = vld [vmem:[#allocation10] sm:$0xf]
        %v2178 = vld [vmem:[#allocation10 + $0x4] sm:$0xf]
        %v2179 = vld [vmem:[#allocation10 + $0x8] sm:$0xf]
        %v2180 = vld [vmem:[#allocation10 + $0xc] sm:$0xf]
        %v2181 = vld [vmem:[%s8] sm:$0x1]
        %v2183 = vlaneseq
        %v2184 = vshrl.u32 %v2183, 7
        %v2185 = vsub.s32 0, %v2184
        %v2186 = vrot.slane %v2181, %v2185
        %v2192 = vunpack.c.l.b16 %v2177
        %v2193 = vunpack.c.l.b16 %v2178
        %v2194 = vunpack.c.l.b16 %v2179
        %v2195 = vunpack.c.l.b16 %v2180
        %v2196 = vpack.c.b16 %v2193, %v2192
        %v2197 = vpack.c.b16 %v2195, %v2194
        %v2201 = vsel %vm449, %v2176, 0
        %2203 = vmatprep.subr.bf16.mxu0 0
        %2204 = vmatpush1.bf16.msra.mxu0 %v2196
        %2205 = vmatprep.subr.bf16.mxu0 0
        %2206 = vmatpush1.bf16.msra.mxu0 %v2197
        %2207 = vmatprep.subr.bf16.mxu0 0
        %2208 = vmatpush1.bf16.msra.mxu0 0
        %2209 = vmatprep.subr.bf16.mxu0 0
        %2210 = vmatpush1.bf16.msra.mxu0 0
        %2211 = vmatprep.subr.bf16.mxu0 0
        %2212 = vmatpush1.bf16.msra.mxu0 0
        %2213 = vmatprep.subr.bf16.mxu0 0
        %2214 = vmatpush1.bf16.msra.mxu0 0
        %2215 = vmatprep.subr.bf16.mxu0 0
        %2216 = vmatpush1.bf16.msra.mxu0 0
        %2217 = vmatprep.subr.bf16.mxu0 0
        %2218 = vmatpush1.bf16.msra.mxu0 0
        %2219 = vmatprep.subr.bf16.mxu0 0
        %2220 = vmatpush1.bf16.msra.mxu0 0
        %2221 = vmatprep.subr.bf16.mxu0 0
        %2222 = vmatpush1.bf16.msra.mxu0 0
        %2223 = vmatprep.subr.bf16.mxu0 0
        %2224 = vmatpush1.bf16.msra.mxu0 0
        %2225 = vmatprep.subr.bf16.mxu0 0
        %2226 = vmatpush1.bf16.msra.mxu0 0
        %2227 = vmatprep.subr.bf16.mxu0 0
        %2228 = vmatpush1.bf16.msra.mxu0 0
        %2229 = vmatprep.subr.bf16.mxu0 0
        %2230 = vmatpush1.bf16.msra.mxu0 0
        %2231 = vmatprep.subr.bf16.mxu0 0
        %2232 = vmatpush1.bf16.msra.mxu0 0
        %2233 = vmatprep.subr.bf16.mxu0 0
        %2234 = vmatpush1.bf16.msra.mxu0 0
        %2235 = vmatprep.mubr.bf16.mxu0 0
        %2236 = vmatmul.mubr.bf16.gmra.mrb[0].mxu0 %v2201
        %v2237 = vpop.f32.mrb[0].mxu0
        %v2238 = vadd.f32 %v2186, %v2237
        %v2239 = vpop.f32.mrb[0].mxu0
        %v2240 = vpop.f32.mrb[0].mxu0
        %v2241 = vpop.f32.mrb[0].mxu0
        %2242 = vdwg.mxu0
        %2243 = vst.msk [vmem:[%s408] sm:$0xff] %vm449, %v2238
        %s2244 = sand.u32 %s246, 1
        %s2245 = scalar_lea.sflag [#allocation6], %s2244
        %s2246 = sand.u32 %s246, 1
        %s2247 = smul.addr %s2246, 8
        %s2248 = scalar_lea.vmem [#allocation12], %s2247
        // Predicated region
        $region77: #{tpu_custom_call.1} parent=55 // pred_check
          %p2249 = pneg %p256
        $region78: #{tpu_custom_call.1} parent=55 // pred_check_branch
          %2251 = sbr.rel (%p2249) target = $region80
        $region79: #{tpu_custom_call.1} parent=55 // pred_region
          %s2253 = ssub.s32 128, 128
          %2254 = vsyncadd %s2245, %s2253
          %s2255 = sadd.s32 %s33, %s32
          %s2256 = smul.addr %s2255, 128
          %s2257 = scalar_lea.hbm %s9, %s2256
          %s2259 = sshll.u32 %s2248, 4
          %s2260 = int_to_ptr.vmem [resolvable:$true] %s2259
          %2262 = dma.vmem_to_hbm [thread:$0]  %s2260, 128, %s2257, %s2245
        $region80: #{tpu_custom_call.1} parent=55 // pred_fallthru
          _
      $region56: #{tpu_custom_call.1} parent=5 // pred_fallthru
        _
      %p2263 = scmp.le.s32.totalorder 2, %s23
      // Predicated region
      $region81: #{tpu_custom_call.1} parent=5 // pred_check
        %p2264 = pneg %p2263
      $region82: #{tpu_custom_call.1} parent=5 // pred_check_branch
        %2266 = sbr.rel (%p2264) target = $region84
      $region83: #{tpu_custom_call.1} parent=5 // pred_region
        %s2267 = ssub.s32 %s23, 2
        // Predicated region
        $region85: #{tpu_custom_call.1} parent=83 // pred_check
          %p2268 = pneg %p262
        $region86: #{tpu_custom_call.1} parent=83 // pred_check_branch
          %2270 = sbr.rel (%p2268) target = $region88
        $region87: #{tpu_custom_call.1} parent=83 // pred_region
          %s2271 = sand.u32 %s247, 1
          %s2272 = scalar_lea.sflag [#allocation6], %s2271
          %s2273 = sand.u32 %s247, 1
          %s2274 = smul.addr %s2273, 8
          %s2275 = scalar_lea.vmem [#allocation12], %s2274
          %2276 = dma.done %s2272, 128
        $region88: #{tpu_custom_call.1} parent=83 // pred_fallthru
          _
      $region84: #{tpu_custom_call.1} parent=5 // pred_fallthru
        _
    $region6: #{tpu_custom_call.1} parent=1 // loop_footer
      %s27 = sadd.s32 1, %s23
    $region7: #{tpu_custom_call.1} parent=1 // loop_footer_branch
      %22 = sbr.rel target = $region3
    $region8: #{tpu_custom_call.1} parent=1 // loop_exit
      _
    %2277 = vsyncpa [#allocation5], 1
    %s2278 = scalar_lea.sflag [#allocation5], 1
    %2279 = vsyncpa %s2278, 1
    %2280 = vsyncpa [#allocation8], 1
    %2281 = vsyncpa [#allocation11], 1
    %2282 = vsyncpa [#allocation6], 1
    %s2283 = scalar_lea.sflag [#allocation6], 1
    %2284 = vsyncpa %s2283, 1

</llo_original>
